<compile_context>
chip_gen: v5e
topology: v5e:2x2
jax: 0.10.0
libtpu: 0.0.40
codegen_flags: <defaults>
</compile_context>

<pallas_src>
import functools

import jax
import jax.numpy as jnp
from jax.experimental import pallas as pl
from jax.experimental.pallas import tpu as pltpu

# ----- hyperparameters mirroring ColorSDFNet defaults -----
INPUT_CH = 3            # embed channels
INPUT_CH_POS = 12       # positional embedding channels
INPUT_CH_COLOR = 3      # color embedding channels
GEO_FEAT_DIM = 15
HIDDEN_DIM = 64         # SDF net hidden    (num_layers = 2)
HIDDEN_DIM_COLOR = 64   # Color net hidden  (num_layers_color = 3)

SDF_IN = INPUT_CH + INPUT_CH_POS                 # 15
COLOR_IN = INPUT_CH_POS + INPUT_CH_COLOR + GEO_FEAT_DIM  # 30
D_IN = INPUT_CH + INPUT_CH_POS + INPUT_CH_COLOR  # 18  (merged kernel input)

SELU_ALPHA = 1.6732632423543772848170429916717
SELU_SCALE = 1.0507009873554804934193349852946


def _swish(x):
    return x * jax.nn.sigmoid(x)


def _selu(x):
    # exp only on the non-positive branch so the unselected side never overflows
    return SELU_SCALE * jnp.where(
        x > 0, x, SELU_ALPHA * (jnp.exp(jnp.minimum(x, 0.0)) - 1.0))


def _round_up(x, m):
    return (x + m - 1) // m * m


def colorsdf_kernel(x_ref, wa_ref, wb_ref, wc1_ref, wc2_ref, out_ref):
    x = x_ref[...]                                              # (BM, 18) bf16

    # fused layer A: [h0_pre | (pos,color) contribution to c0_pre]
    y = jnp.dot(x, wa_ref[...], preferred_element_type=jnp.float32)      # (BM, 128) f32
    h0 = _swish(y[:, :HIDDEN_DIM])                                       # (BM, 64)  f32

    # fused layer B: [geo contribution to c0_pre | sdf | 0-pad]
    z = jnp.dot(h0.astype(jnp.bfloat16), wb_ref[...],
                preferred_element_type=jnp.float32)                      # (BM, 128) f32
    sdf = z[:, HIDDEN_DIM_COLOR:HIDDEN_DIM_COLOR + 1]                    # (BM, 1)

    c0 = _swish(y[:, HIDDEN_DIM:] + z[:, :HIDDEN_DIM_COLOR])             # (BM, 64)
    c1 = _selu(jnp.dot(c0.astype(jnp.bfloat16), wc1_ref[...],
                       preferred_element_type=jnp.float32))              # (BM, 64)
    rgb = jnp.dot(c1.astype(jnp.bfloat16), wc2_ref[...],
                  preferred_element_type=jnp.float32)                    # (BM, 3)

    # direct slice stores (no in-kernel concatenate)
    out_ref[:, 0:3] = rgb.astype(out_ref.dtype)
    out_ref[:, 3:4] = sdf.astype(out_ref.dtype)


def make_params(key):
    """Deterministic init; Linear weights stored (in_features, out_features), no biases."""
    ks = jax.random.split(key, 5)

    def lin(k, shape):
        bound = 1.0 / (shape[0] ** 0.5)
        return jax.random.uniform(k, shape, jnp.float32, -bound, bound)

    return {
        "w_s0": lin(ks[0], (SDF_IN, HIDDEN_DIM)),                  # (15, 64)
        "w_s1": lin(ks[1], (HIDDEN_DIM, 1 + GEO_FEAT_DIM)),        # (64, 16)
        "w_c0": lin(ks[2], (COLOR_IN, HIDDEN_DIM_COLOR)),          # (30, 64)
        "w_c1": lin(ks[3], (HIDDEN_DIM_COLOR, HIDDEN_DIM_COLOR)),  # (64, 64)
        "w_c2": lin(ks[4], (HIDDEN_DIM_COLOR, 3)),                 # (64, 3)
    }


@functools.partial(jax.jit, static_argnames=("block_rows",))
def colorsdfnet_forward(embed, embed_pos, embed_color, params, block_rows=2048):
    N = embed.shape[0]
    out_dtype = embed.dtype

    w_s0, w_s1 = params["w_s0"], params["w_s1"]
    w_c0, w_c1, w_c2 = params["w_c0"], params["w_c1"], params["w_c2"]

    # ---- wrapper-side algebraic fusion of the small layers (f32 algebra, then bf16) ----
    # X feature layout: [embed(0:3) | pos(3:15) | color(15:18)]
    # W_c0 row layout : [pos(0:12)  | color(12:15) | geo(15:30)]
    w_a = jnp.zeros((D_IN, 2 * HIDDEN_DIM), jnp.float32)
    w_a = w_a.at[:SDF_IN, :HIDDEN_DIM].set(w_s0)                 # SDF layer 0 ([embed|pos])
    w_a = w_a.at[INPUT_CH:, HIDDEN_DIM:].set(w_c0[:SDF_IN, :])   # color layer 0 ([pos|color] part)

    w_b = jnp.zeros((HIDDEN_DIM, 2 * HIDDEN_DIM_COLOR), jnp.float32)
    w_b = w_b.at[:, :HIDDEN_DIM_COLOR].set(w_s1[:, 1:] @ w_c0[SDF_IN:, :])  # geo -> c0 folded
    w_b = w_b.at[:, HIDDEN_DIM_COLOR].set(w_s1[:, 0])                       # sdf column

    w_a = w_a.astype(jnp.bfloat16)
    w_b = w_b.astype(jnp.bfloat16)
    w_c1b = w_c1.astype(jnp.bfloat16)
    w_c2b = w_c2.astype(jnp.bfloat16)

    # ---- merge the three inputs into one bf16 operand (one DMA stream) ----
    x = jnp.concatenate([embed, embed_pos, embed_color], axis=-1).astype(jnp.bfloat16)

    # Large row tiles; any N supported via a zero-padded tail (sliced off at the end).
    bm = min(block_rows, _round_up(N, 8))
    n_pad = _round_up(N, bm)
    if n_pad != N:
        x = jnp.pad(x, ((0, n_pad - N), (0, 0)))

    grid = (n_pad // bm,)

    def whole(a):
        return pl.BlockSpec(a.shape, lambda i: (0, 0))

    out = pl.pallas_call(
        colorsdf_kernel,
        out_shape=jax.ShapeDtypeStruct((n_pad, 4), out_dtype),
        grid_spec=pltpu.PrefetchScalarGridSpec(
            num_scalar_prefetch=0,
            grid=grid,
            in_specs=[
                pl.BlockSpec((bm, D_IN), lambda i: (i, 0)),
                whole(w_a),
                whole(w_b),
                whole(w_c1b),
                whole(w_c2b),
            ],
            out_specs=pl.BlockSpec((bm, 4), lambda i: (i, 0)),
        ),
        compiler_params=pltpu.CompilerParams(
            dimension_semantics=("parallel",),          # megacore-shardable on v7x
            vmem_limit_bytes=32 * 1024 * 1024,          # raise v5e's 16 MiB default
        ),
    )(x, w_a, w_b, w_c1b, w_c2b)
    return out[:N]


def reference_forward(embed, embed_pos, embed_color, params):
    """Pure-JAX f32 reference mirroring the PyTorch ColorSDFNet forward exactly."""
    x = jnp.concatenate([embed, embed_pos], axis=-1)
    h = _swish(x @ params["w_s0"]) @ params["w_s1"]
    sdf, geo = h[..., :1], h[..., 1:]
    c_in = jnp.concatenate([embed_pos, embed_color, geo], axis=-1)
    c0 = _swish(c_in @ params["w_c0"])
    c1 = _selu(c0 @ params["w_c1"])
    rgb = c1 @ params["w_c2"]
    return jnp.concatenate([rgb, sdf], axis=-1)


if __name__ == "__main__":
    key = jax.random.PRNGKey(0)
    k_e, k_p, k_c, k_par = jax.random.split(key, 4)

    N = 300  # deliberately not a multiple of the tile size -> exercises the padded tail
    embed = jax.random.normal(k_e, (N, INPUT_CH), jnp.float32)
    embed_pos = jax.random.normal(k_p, (N, INPUT_CH_POS), jnp.float32)
    embed_color = jax.random.normal(k_c, (N, INPUT_CH_COLOR), jnp.float32)
    params = make_params(k_par)

    out = colorsdfnet_forward(embed, embed_pos, embed_color, params)
    out = jax.block_until_ready(out)

    ref = reference_forward(embed, embed_pos, embed_color, params)
    assert out.shape == (N, 4)
    max_err = float(jnp.max(jnp.abs(out - ref)))
    # bf16 MXU operands -> relaxed tolerance vs the f32 reference.
    assert jnp.allclose(out, ref, atol=5e-2, rtol=5e-2), max_err

    print("KERNEL_OK")
</pallas_src>

<mosaic_0001>
module attributes {stable_mosaic.version = 11 : i64} {
  func.func @colorsdf_kernel(%arg0: i32, %arg1: memref<304x18xbf16, #tpu.memory_space<vmem>>, %arg2: memref<18x128xbf16, #tpu.memory_space<vmem>>, %arg3: memref<64x128xbf16, #tpu.memory_space<vmem>>, %arg4: memref<64x64xbf16, #tpu.memory_space<vmem>>, %arg5: memref<64x3xbf16, #tpu.memory_space<vmem>>, %arg6: memref<304x4xf32, #tpu.memory_space<vmem>>) attributes {dimension_semantics = [#tpu.dimension_semantics<parallel>], iteration_bounds = array<i64: 1>, scalar_prefetch = 0 : i64, scratch_operands = 0 : i64, tpu.core_type = #tpu.core_type<tc>, window_params = [{transform_indices = @transform_0, window_bounds = array<i64: 304, 18>}, {pipeline_mode = #tpu.pipeline_mode<synchronous>, transform_indices = @transform_1, window_bounds = array<i64: 18, 128>}, {pipeline_mode = #tpu.pipeline_mode<synchronous>, transform_indices = @transform_2, window_bounds = array<i64: 64, 128>}, {pipeline_mode = #tpu.pipeline_mode<synchronous>, transform_indices = @transform_3, window_bounds = array<i64: 64, 64>}, {pipeline_mode = #tpu.pipeline_mode<synchronous>, transform_indices = @transform_4, window_bounds = array<i64: 64, 3>}, {transform_indices = @transform_5, window_bounds = array<i64: 304, 4>}]} {
    %c0 = arith.constant 0 : index
    %c0_0 = arith.constant 0 : index
    %0 = vector.load %arg1[%c0, %c0_0] : memref<304x18xbf16, #tpu.memory_space<vmem>>, vector<304x18xbf16>
    %c0_1 = arith.constant 0 : index
    %c0_2 = arith.constant 0 : index
    %1 = vector.load %arg2[%c0_1, %c0_2] : memref<18x128xbf16, #tpu.memory_space<vmem>>, vector<18x128xbf16>
    %cst = arith.constant dense<0.000000e+00> : vector<304x128xf32>
    %2 = tpu.matmul %0, %1, %cst {dimension_numbers = #tpu.dot_dimension_numbers<[1], [0], [0], [1], [0, 0, 1, 1], [], []>} : vector<304x18xbf16>, vector<18x128xbf16>, vector<304x128xf32> -> vector<304x128xf32>
    %3 = vector.extract_strided_slice %2 {offsets = [0, 0], sizes = [304, 64], strides = [1, 1]} : vector<304x128xf32> to vector<304x64xf32>
    %4 = arith.negf %3 : vector<304x64xf32>
    %5 = math.exp %4 : vector<304x64xf32>
    %cst_3 = arith.constant 1.000000e+00 : f32
    %6 = vector.broadcast %cst_3 : f32 to vector<304x64xf32>
    %7 = arith.addf %6, %5 : vector<304x64xf32>
    %8 = arith.divf %6, %7 : vector<304x64xf32>
    %9 = arith.mulf %3, %8 : vector<304x64xf32>
    %10 = arith.truncf %9 : vector<304x64xf32> to vector<304x64xbf16>
    %c0_4 = arith.constant 0 : index
    %c0_5 = arith.constant 0 : index
    %11 = vector.load %arg3[%c0_4, %c0_5] : memref<64x128xbf16, #tpu.memory_space<vmem>>, vector<64x128xbf16>
    %cst_6 = arith.constant dense<0.000000e+00> : vector<304x128xf32>
    %12 = tpu.matmul %10, %11, %cst_6 {dimension_numbers = #tpu.dot_dimension_numbers<[1], [0], [0], [1], [0, 0, 1, 1], [], []>} : vector<304x64xbf16>, vector<64x128xbf16>, vector<304x128xf32> -> vector<304x128xf32>
    %13 = vector.extract_strided_slice %12 {offsets = [0, 64], sizes = [304, 1], strides = [1, 1]} : vector<304x128xf32> to vector<304x1xf32>
    %14 = vector.extract_strided_slice %2 {offsets = [0, 64], sizes = [304, 64], strides = [1, 1]} : vector<304x128xf32> to vector<304x64xf32>
    %15 = vector.extract_strided_slice %12 {offsets = [0, 0], sizes = [304, 64], strides = [1, 1]} : vector<304x128xf32> to vector<304x64xf32>
    %16 = arith.addf %14, %15 : vector<304x64xf32>
    %17 = arith.negf %16 : vector<304x64xf32>
    %18 = math.exp %17 : vector<304x64xf32>
    %cst_7 = arith.constant 1.000000e+00 : f32
    %19 = vector.broadcast %cst_7 : f32 to vector<304x64xf32>
    %20 = arith.addf %19, %18 : vector<304x64xf32>
    %21 = arith.divf %19, %20 : vector<304x64xf32>
    %22 = arith.mulf %16, %21 : vector<304x64xf32>
    %23 = arith.truncf %22 : vector<304x64xf32> to vector<304x64xbf16>
    %c0_8 = arith.constant 0 : index
    %c0_9 = arith.constant 0 : index
    %24 = vector.load %arg4[%c0_8, %c0_9] : memref<64x64xbf16, #tpu.memory_space<vmem>>, vector<64x64xbf16>
    %cst_10 = arith.constant dense<0.000000e+00> : vector<304x64xf32>
    %25 = tpu.matmul %23, %24, %cst_10 {dimension_numbers = #tpu.dot_dimension_numbers<[1], [0], [0], [1], [0, 0, 1, 1], [], []>} : vector<304x64xbf16>, vector<64x64xbf16>, vector<304x64xf32> -> vector<304x64xf32>
    %cst_11 = arith.constant 0.000000e+00 : f32
    %26 = vector.broadcast %cst_11 : f32 to vector<304x64xf32>
    %27 = arith.cmpf ogt, %25, %26 : vector<304x64xf32>
    %cst_12 = arith.constant 0.000000e+00 : f32
    %28 = vector.broadcast %cst_12 : f32 to vector<304x64xf32>
    %29 = arith.minimumf %25, %28 : vector<304x64xf32>
    %30 = math.exp %29 : vector<304x64xf32>
    %cst_13 = arith.constant 1.000000e+00 : f32
    %31 = vector.broadcast %cst_13 : f32 to vector<304x64xf32>
    %32 = arith.subf %30, %31 : vector<304x64xf32>
    %cst_14 = arith.constant 1.67326319 : f32
    %33 = vector.broadcast %cst_14 : f32 to vector<304x64xf32>
    %34 = arith.mulf %33, %32 : vector<304x64xf32>
    %35 = arith.select %27, %25, %34 : vector<304x64xi1>, vector<304x64xf32>
    %cst_15 = arith.constant 1.05070102 : f32
    %36 = vector.broadcast %cst_15 : f32 to vector<304x64xf32>
    %37 = arith.mulf %36, %35 : vector<304x64xf32>
    %38 = arith.truncf %37 : vector<304x64xf32> to vector<304x64xbf16>
    %c0_16 = arith.constant 0 : index
    %c0_17 = arith.constant 0 : index
    %39 = vector.load %arg5[%c0_16, %c0_17] : memref<64x3xbf16, #tpu.memory_space<vmem>>, vector<64x3xbf16>
    %cst_18 = arith.constant dense<0.000000e+00> : vector<304x3xf32>
    %40 = tpu.matmul %38, %39, %cst_18 {dimension_numbers = #tpu.dot_dimension_numbers<[1], [0], [0], [1], [0, 0, 1, 1], [], []>} : vector<304x64xbf16>, vector<64x3xbf16>, vector<304x3xf32> -> vector<304x3xf32>
    %c0_19 = arith.constant 0 : index
    %c0_20 = arith.constant 0 : index
    %41 = vector.load %arg6[%c0_19, %c0_20] : memref<304x4xf32, #tpu.memory_space<vmem>>, vector<304x3xf32>
    tpu.vector_store %arg6[%c0_19, %c0_20], %40 {strides = array<i32>} : memref<304x4xf32, #tpu.memory_space<vmem>>, vector<304x3xf32>,
    %c0_21 = arith.constant 0 : index
    %c3 = arith.constant 3 : index
    %42 = vector.load %arg6[%c0_21, %c3] : memref<304x4xf32, #tpu.memory_space<vmem>>, vector<304x1xf32>
    tpu.vector_store %arg6[%c0_21, %c3], %13 {strides = array<i32>} : memref<304x4xf32, #tpu.memory_space<vmem>>, vector<304x1xf32>,
    return
  }
  func.func @transform_0(%arg0: i32) -> (i32, i32) {
    %c0_i32 = arith.constant 0 : i32
    %c0_i32_0 = arith.constant 0 : i32
    return %arg0, %c0_i32 : i32, i32
  }
  func.func @transform_1(%arg0: i32) -> (i32, i32) {
    %c0_i32 = arith.constant 0 : i32
    %c0_i32_0 = arith.constant 0 : i32
    %c0_i32_1 = arith.constant 0 : i32
    return %c0_i32, %c0_i32_0 : i32, i32
  }
  func.func @transform_2(%arg0: i32) -> (i32, i32) {
    %c0_i32 = arith.constant 0 : i32
    %c0_i32_0 = arith.constant 0 : i32
    %c0_i32_1 = arith.constant 0 : i32
    return %c0_i32, %c0_i32_0 : i32, i32
  }
  func.func @transform_3(%arg0: i32) -> (i32, i32) {
    %c0_i32 = arith.constant 0 : i32
    %c0_i32_0 = arith.constant 0 : i32
    %c0_i32_1 = arith.constant 0 : i32
    return %c0_i32, %c0_i32_0 : i32, i32
  }
  func.func @transform_4(%arg0: i32) -> (i32, i32) {
    %c0_i32 = arith.constant 0 : i32
    %c0_i32_0 = arith.constant 0 : i32
    %c0_i32_1 = arith.constant 0 : i32
    return %c0_i32, %c0_i32_0 : i32, i32
  }
  func.func @transform_5(%arg0: i32) -> (i32, i32) {
    %c0_i32 = arith.constant 0 : i32
    %c0_i32_0 = arith.constant 0 : i32
    return %arg0, %c0_i32 : i32, i32
  }
}

</mosaic_0001>

<llo_original>
// kernel: colorsdfnet_forward.1
$region0: #{colorsdfnet_forward.1}
  #allocation0 [shape = 'u32[]', space=smem, size = 0x4, offset = 0x4, fixed_abs, tag = 'smem constant byte address 0x4 - core index']
  #allocation1 [shape = 'u32[72,128]{1,0:T(1,128)}', space=vmem, size = 0x9000, scoped, tag = 'internal scratch']
  %s0 = inlined_call_operand.vmem [shape: bf16[304,18], index: 0, kind: input, shape index: {}]
  %s1 = inlined_call_operand.vmem [shape: bf16[18,128], index: 1, kind: input, shape index: {}]
  %s2 = inlined_call_operand.vmem [shape: bf16[64,128], index: 2, kind: input, shape index: {}]
  %s3 = inlined_call_operand.vmem [shape: bf16[64,64], index: 3, kind: input, shape index: {}]
  %s4 = inlined_call_operand.vmem [shape: bf16[64,3], index: 4, kind: input, shape index: {}]
  %s5 = inlined_call_operand.vmem [shape: f32[304,4], index: 5, kind: output, shape index: {}]
  %s6 = sld [smem:[#allocation0]]
  $region30: #{colorsdfnet_forward.1} parent=0
    _
  %s8 = ssub.s32 1, %s6
  %s9 = scalar_select 0, %s8, %s6
  // Predicated region
  $region2: #{colorsdfnet_forward.1} parent=0 // pred_check
    _
  $region3: #{colorsdfnet_forward.1} parent=0 // pred_check_branch
    %11 = sbr.rel (0) target = $region5
  $region4: #{colorsdfnet_forward.1} parent=0 // pred_region
    _
  $region5: #{colorsdfnet_forward.1} parent=0 // pred_fallthru
    _
  // Predicated region
  $region6: #{colorsdfnet_forward.1} parent=0 // pred_check
    _
  $region7: #{colorsdfnet_forward.1} parent=0 // pred_check_branch
    %13 = sbr.rel (0) target = $region9
  $region8: #{colorsdfnet_forward.1} parent=0 // pred_region
    _
  $region9: #{colorsdfnet_forward.1} parent=0 // pred_fallthru
    _
  // Predicated region
  $region10: #{colorsdfnet_forward.1} parent=0 // pred_check
    _
  $region11: #{colorsdfnet_forward.1} parent=0 // pred_check_branch
    %15 = sbr.rel (0) target = $region13
  $region12: #{colorsdfnet_forward.1} parent=0 // pred_region
    _
  $region13: #{colorsdfnet_forward.1} parent=0 // pred_fallthru
    _
  // Predicated region
  $region14: #{colorsdfnet_forward.1} parent=0 // pred_check
    _
  $region15: #{colorsdfnet_forward.1} parent=0 // pred_check_branch
    %17 = sbr.rel (0) target = $region17
  $region16: #{colorsdfnet_forward.1} parent=0 // pred_region
    _
  $region17: #{colorsdfnet_forward.1} parent=0 // pred_fallthru
    _
  // Predicated region
  $region18: #{colorsdfnet_forward.1} parent=0 // pred_check
    _
  $region19: #{colorsdfnet_forward.1} parent=0 // pred_check_branch
    %19 = sbr.rel (0) target = $region21
  $region20: #{colorsdfnet_forward.1} parent=0 // pred_region
    _
  $region21: #{colorsdfnet_forward.1} parent=0 // pred_fallthru
    _
  %v21 = vld [vmem:[%s0] sm:$0xf]
  %v22 = vld [vmem:[%s0 + $0x4] sm:$0xf]
  %v23 = vld [vmem:[%s0 + $0x8] sm:$0xf]
  %v24 = vld [vmem:[%s0 + $0xc] sm:$0xf]
  %v25 = vld [vmem:[%s0 + $0x10] sm:$0xf]
  %v26 = vld [vmem:[%s0 + $0x14] sm:$0xf]
  %v27 = vld [vmem:[%s0 + $0x18] sm:$0xf]
  %v28 = vld [vmem:[%s0 + $0x1c] sm:$0xf]
  %v29 = vld [vmem:[%s0 + $0x20] sm:$0xf]
  %v30 = vld [vmem:[%s0 + $0x24] sm:$0xf]
  %v31 = vld [vmem:[%s0 + $0x28] sm:$0xf]
  %v32 = vld [vmem:[%s0 + $0x2c] sm:$0xf]
  %v33 = vld [vmem:[%s0 + $0x30] sm:$0xf]
  %v34 = vld [vmem:[%s0 + $0x34] sm:$0xf]
  %v35 = vld [vmem:[%s0 + $0x38] sm:$0xf]
  %v36 = vld [vmem:[%s0 + $0x3c] sm:$0xf]
  %v37 = vld [vmem:[%s0 + $0x40] sm:$0xf]
  %v38 = vld [vmem:[%s0 + $0x44] sm:$0xf]
  %v39 = vld [vmem:[%s0 + $0x48] sm:$0xf]
  %v40 = vld [vmem:[%s0 + $0x4c] sm:$0xf]
  %v41 = vld [vmem:[%s0 + $0x50] sm:$0xf]
  %v42 = vld [vmem:[%s0 + $0x54] sm:$0xf]
  %v43 = vld [vmem:[%s0 + $0x58] sm:$0xf]
  %v44 = vld [vmem:[%s0 + $0x5c] sm:$0xf]
  %v45 = vld [vmem:[%s0 + $0x60] sm:$0xf]
  %v46 = vld [vmem:[%s0 + $0x64] sm:$0xf]
  %v47 = vld [vmem:[%s0 + $0x68] sm:$0xf]
  %v48 = vld [vmem:[%s0 + $0x6c] sm:$0xf]
  %v49 = vld [vmem:[%s0 + $0x70] sm:$0xf]
  %v50 = vld [vmem:[%s0 + $0x74] sm:$0xf]
  %v51 = vld [vmem:[%s0 + $0x78] sm:$0xf]
  %v52 = vld [vmem:[%s0 + $0x7c] sm:$0xf]
  %v53 = vld [vmem:[%s0 + $0x80] sm:$0xf]
  %v54 = vld [vmem:[%s0 + $0x84] sm:$0xf]
  %v55 = vld [vmem:[%s0 + $0x88] sm:$0xf]
  %v56 = vld [vmem:[%s0 + $0x8c] sm:$0xf]
  %v57 = vld [vmem:[%s0 + $0x90] sm:$0xf]
  %v58 = vld [vmem:[%s0 + $0x94] sm:$0xf]
  %v59 = vld [vmem:[%s1] sm:$0xf]
  %v60 = vld [vmem:[%s1 + $0x4] sm:$0xf]
  %v61 = vld [vmem:[%s1 + $0x8] sm:$0x1]
  %v100 = vunpack.c.l.b16 %v21
  %v101 = vunpack.c.l.b16 %v22
  %v102 = vunpack.c.l.b16 %v23
  %v103 = vunpack.c.l.b16 %v24
  %v104 = vunpack.c.l.b16 %v25
  %v105 = vunpack.c.l.b16 %v26
  %v106 = vunpack.c.l.b16 %v27
  %v107 = vunpack.c.l.b16 %v28
  %v108 = vunpack.c.l.b16 %v29
  %v109 = vunpack.c.l.b16 %v30
  %v110 = vunpack.c.l.b16 %v31
  %v111 = vunpack.c.l.b16 %v32
  %v112 = vunpack.c.l.b16 %v33
  %v113 = vunpack.c.l.b16 %v34
  %v114 = vunpack.c.l.b16 %v35
  %v115 = vunpack.c.l.b16 %v36
  %v116 = vunpack.c.l.b16 %v37
  %v117 = vunpack.c.l.b16 %v38
  %v118 = vunpack.c.l.b16 %v39
  %v119 = vunpack.c.l.b16 %v40
  %v120 = vunpack.c.l.b16 %v41
  %v121 = vunpack.c.l.b16 %v42
  %v122 = vunpack.c.l.b16 %v43
  %v123 = vunpack.c.l.b16 %v44
  %v124 = vunpack.c.l.b16 %v45
  %v125 = vunpack.c.l.b16 %v46
  %v126 = vunpack.c.l.b16 %v47
  %v127 = vunpack.c.l.b16 %v48
  %v128 = vunpack.c.l.b16 %v49
  %v129 = vunpack.c.l.b16 %v50
  %v130 = vunpack.c.l.b16 %v51
  %v131 = vunpack.c.l.b16 %v52
  %v132 = vunpack.c.l.b16 %v53
  %v133 = vunpack.c.l.b16 %v54
  %v134 = vunpack.c.l.b16 %v55
  %v135 = vunpack.c.l.b16 %v56
  %v136 = vunpack.c.l.b16 %v57
  %v137 = vunpack.c.l.b16 %v58
  %v138 = vpack.c.b16 %v101, %v100
  %v139 = vpack.c.b16 %v103, %v102
  %v140 = vpack.c.b16 %v105, %v104
  %v141 = vpack.c.b16 %v107, %v106
  %v142 = vpack.c.b16 %v109, %v108
  %v143 = vpack.c.b16 %v111, %v110
  %v144 = vpack.c.b16 %v113, %v112
  %v145 = vpack.c.b16 %v115, %v114
  %v146 = vpack.c.b16 %v117, %v116
  %v147 = vpack.c.b16 %v119, %v118
  %v148 = vpack.c.b16 %v121, %v120
  %v149 = vpack.c.b16 %v123, %v122
  %v150 = vpack.c.b16 %v125, %v124
  %v151 = vpack.c.b16 %v127, %v126
  %v152 = vpack.c.b16 %v129, %v128
  %v153 = vpack.c.b16 %v131, %v130
  %v154 = vpack.c.b16 %v133, %v132
  %v155 = vpack.c.b16 %v135, %v134
  %v156 = vpack.c.b16 %v137, %v136
  %v160 = vunpack.c.l.b16 %v59
  %v161 = vunpack.c.l.b16 %v60
  %v162 = vunpack.c.l.b16 %v61
  %v163 = vpack.c.b16 %v161, %v160
  %v164 = vpack.c.b16 %v162, %v162
  %vm166 = vcmask 146432
  %v168 = vsel %vm166, %v138, 0
  %v171 = vsel %vm166, %v139, 0
  %v174 = vsel %vm166, %v140, 0
  %v177 = vsel %vm166, %v141, 0
  %v180 = vsel %vm166, %v142, 0
  %v183 = vsel %vm166, %v143, 0
  %v186 = vsel %vm166, %v144, 0
  %v189 = vsel %vm166, %v145, 0
  %v192 = vsel %vm166, %v146, 0
  %v195 = vsel %vm166, %v147, 0
  %v198 = vsel %vm166, %v148, 0
  %v201 = vsel %vm166, %v149, 0
  %v204 = vsel %vm166, %v150, 0
  %v207 = vsel %vm166, %v151, 0
  %v210 = vsel %vm166, %v152, 0
  %v213 = vsel %vm166, %v153, 0
  %v216 = vsel %vm166, %v154, 0
  %v219 = vsel %vm166, %v155, 0
  %v222 = vsel %vm166, %v156, 0
  %vm224 = vcmask 1040384
  %v226 = vsel %vm224, %v164, 0
  %228 = vmatpush.bf16.msra.mxu0 0
  %229 = vmatpush.bf16.msra.mxu0 0
  %230 = vmatpush.bf16.msra.mxu0 0
  %231 = vmatpush.bf16.msra.mxu0 0
  %232 = vmatpush.bf16.msra.mxu0 0
  %233 = vmatpush.bf16.msra.mxu0 0
  %234 = vmatpush.bf16.msra.mxu0 %v226
  %235 = vmatpush.bf16.msra.mxu0 %v163
  %236 = vmatmul.bf16.gmra.mxu0 %v168
  %v237 = vpop.f32.mrf.mxu0
  %v238 = vadd.f32 0.0, %v237
  %v239 = vpop.f32.mrf.mxu0
  %v240 = vadd.f32 0.0, %v239
  %241 = vmatmul.bf16.gmra.mxu0 %v171
  %v242 = vpop.f32.mrf.mxu0
  %v243 = vadd.f32 0.0, %v242
  %v244 = vpop.f32.mrf.mxu0
  %v245 = vadd.f32 0.0, %v244
  %246 = vmatmul.bf16.gmra.mxu0 %v174
  %v247 = vpop.f32.mrf.mxu0
  %v248 = vadd.f32 0.0, %v247
  %v249 = vpop.f32.mrf.mxu0
  %v250 = vadd.f32 0.0, %v249
  %251 = vmatmul.bf16.gmra.mxu0 %v177
  %v252 = vpop.f32.mrf.mxu0
  %v253 = vadd.f32 0.0, %v252
  %v254 = vpop.f32.mrf.mxu0
  %v255 = vadd.f32 0.0, %v254
  %256 = vmatmul.bf16.gmra.mxu0 %v180
  %v257 = vpop.f32.mrf.mxu0
  %v258 = vadd.f32 0.0, %v257
  %v259 = vpop.f32.mrf.mxu0
  %v260 = vadd.f32 0.0, %v259
  %261 = vmatmul.bf16.gmra.mxu0 %v183
  %v262 = vpop.f32.mrf.mxu0
  %v263 = vadd.f32 0.0, %v262
  %v264 = vpop.f32.mrf.mxu0
  %v265 = vadd.f32 0.0, %v264
  %266 = vmatmul.bf16.gmra.mxu0 %v186
  %v267 = vpop.f32.mrf.mxu0
  %v268 = vadd.f32 0.0, %v267
  %v269 = vpop.f32.mrf.mxu0
  %v270 = vadd.f32 0.0, %v269
  %271 = vmatmul.bf16.gmra.mxu0 %v189
  %v272 = vpop.f32.mrf.mxu0
  %v273 = vadd.f32 0.0, %v272
  %v274 = vpop.f32.mrf.mxu0
  %v275 = vadd.f32 0.0, %v274
  %276 = vmatmul.bf16.gmra.mxu0 %v192
  %v277 = vpop.f32.mrf.mxu0
  %v278 = vadd.f32 0.0, %v277
  %v279 = vpop.f32.mrf.mxu0
  %v280 = vadd.f32 0.0, %v279
  %281 = vmatmul.bf16.gmra.mxu0 %v195
  %v282 = vpop.f32.mrf.mxu0
  %v283 = vadd.f32 0.0, %v282
  %v284 = vpop.f32.mrf.mxu0
  %v285 = vadd.f32 0.0, %v284
  %286 = vmatmul.bf16.gmra.mxu0 %v198
  %v287 = vpop.f32.mrf.mxu0
  %v288 = vadd.f32 0.0, %v287
  %v289 = vpop.f32.mrf.mxu0
  %v290 = vadd.f32 0.0, %v289
  %291 = vmatmul.bf16.gmra.mxu0 %v201
  %v292 = vpop.f32.mrf.mxu0
  %v293 = vadd.f32 0.0, %v292
  %v294 = vpop.f32.mrf.mxu0
  %v295 = vadd.f32 0.0, %v294
  %296 = vmatmul.bf16.gmra.mxu0 %v204
  %v297 = vpop.f32.mrf.mxu0
  %v298 = vadd.f32 0.0, %v297
  %v299 = vpop.f32.mrf.mxu0
  %v300 = vadd.f32 0.0, %v299
  %301 = vmatmul.bf16.gmra.mxu0 %v207
  %v302 = vpop.f32.mrf.mxu0
  %v303 = vadd.f32 0.0, %v302
  %v304 = vpop.f32.mrf.mxu0
  %v305 = vadd.f32 0.0, %v304
  %306 = vmatmul.bf16.gmra.mxu0 %v210
  %v307 = vpop.f32.mrf.mxu0
  %v308 = vadd.f32 0.0, %v307
  %v309 = vpop.f32.mrf.mxu0
  %v310 = vadd.f32 0.0, %v309
  %311 = vmatmul.bf16.gmra.mxu0 %v213
  %v312 = vpop.f32.mrf.mxu0
  %v313 = vadd.f32 0.0, %v312
  %v314 = vpop.f32.mrf.mxu0
  %v315 = vadd.f32 0.0, %v314
  %316 = vmatmul.bf16.gmra.mxu0 %v216
  %v317 = vpop.f32.mrf.mxu0
  %v318 = vadd.f32 0.0, %v317
  %v319 = vpop.f32.mrf.mxu0
  %v320 = vadd.f32 0.0, %v319
  %321 = vmatmul.bf16.gmra.mxu0 %v219
  %v322 = vpop.f32.mrf.mxu0
  %v323 = vadd.f32 0.0, %v322
  %v324 = vpop.f32.mrf.mxu0
  %v325 = vadd.f32 0.0, %v324
  %326 = vmatmul.bf16.gmra.mxu0 %v222
  %v327 = vpop.f32.mrf.mxu0
  %v328 = vadd.f32 0.0, %v327
  %v329 = vpop.f32.mrf.mxu0
  %v330 = vadd.f32 0.0, %v329
  %331 = vdwg.mxu0
  %v332 = vxor.u32 %v238, 2147483648
  %v333 = vxor.u32 %v240, 2147483648
  %v334 = vxor.u32 %v243, 2147483648
  %v335 = vxor.u32 %v245, 2147483648
  %v336 = vxor.u32 %v248, 2147483648
  %v337 = vxor.u32 %v250, 2147483648
  %v338 = vxor.u32 %v253, 2147483648
  %v339 = vxor.u32 %v255, 2147483648
  %v340 = vxor.u32 %v258, 2147483648
  %v341 = vxor.u32 %v260, 2147483648
  %v342 = vxor.u32 %v263, 2147483648
  %v343 = vxor.u32 %v265, 2147483648
  %v344 = vxor.u32 %v268, 2147483648
  %v345 = vxor.u32 %v270, 2147483648
  %v346 = vxor.u32 %v273, 2147483648
  %v347 = vxor.u32 %v275, 2147483648
  %v348 = vxor.u32 %v278, 2147483648
  %v349 = vxor.u32 %v280, 2147483648
  %v350 = vxor.u32 %v283, 2147483648
  %v351 = vxor.u32 %v285, 2147483648
  %v352 = vxor.u32 %v288, 2147483648
  %v353 = vxor.u32 %v290, 2147483648
  %v354 = vxor.u32 %v293, 2147483648
  %v355 = vxor.u32 %v295, 2147483648
  %v356 = vxor.u32 %v298, 2147483648
  %v357 = vxor.u32 %v300, 2147483648
  %v358 = vxor.u32 %v303, 2147483648
  %v359 = vxor.u32 %v305, 2147483648
  %v360 = vxor.u32 %v308, 2147483648
  %v361 = vxor.u32 %v310, 2147483648
  %v362 = vxor.u32 %v313, 2147483648
  %v363 = vxor.u32 %v315, 2147483648
  %v364 = vxor.u32 %v318, 2147483648
  %v365 = vxor.u32 %v320, 2147483648
  %v366 = vxor.u32 %v323, 2147483648
  %v367 = vxor.u32 %v325, 2147483648
  %v368 = vxor.u32 %v328, 2147483648
  %v369 = vxor.u32 %v330, 2147483648
  %v370 = vmul.f32 %v332, 1.442695
  %v371 = vpow.pop %v370
  %v372 = vmul.f32 %v333, 1.442695
  %v373 = vpow.pop %v372
  %v374 = vmul.f32 %v334, 1.442695
  %v375 = vpow.pop %v374
  %v376 = vmul.f32 %v335, 1.442695
  %v377 = vpow.pop %v376
  %v378 = vmul.f32 %v336, 1.442695
  %v379 = vpow.pop %v378
  %v380 = vmul.f32 %v337, 1.442695
  %v381 = vpow.pop %v380
  %v382 = vmul.f32 %v338, 1.442695
  %v383 = vpow.pop %v382
  %v384 = vmul.f32 %v339, 1.442695
  %v385 = vpow.pop %v384
  %v386 = vmul.f32 %v340, 1.442695
  %v387 = vpow.pop %v386
  %v388 = vmul.f32 %v341, 1.442695
  %v389 = vpow.pop %v388
  %v390 = vmul.f32 %v342, 1.442695
  %v391 = vpow.pop %v390
  %v392 = vmul.f32 %v343, 1.442695
  %v393 = vpow.pop %v392
  %v394 = vmul.f32 %v344, 1.442695
  %v395 = vpow.pop %v394
  %v396 = vmul.f32 %v345, 1.442695
  %v397 = vpow.pop %v396
  %v398 = vmul.f32 %v346, 1.442695
  %v399 = vpow.pop %v398
  %v400 = vmul.f32 %v347, 1.442695
  %v401 = vpow.pop %v400
  %v402 = vmul.f32 %v348, 1.442695
  %v403 = vpow.pop %v402
  %v404 = vmul.f32 %v349, 1.442695
  %v405 = vpow.pop %v404
  %v406 = vmul.f32 %v350, 1.442695
  %v407 = vpow.pop %v406
  %v408 = vmul.f32 %v351, 1.442695
  %v409 = vpow.pop %v408
  %v410 = vmul.f32 %v352, 1.442695
  %v411 = vpow.pop %v410
  %v412 = vmul.f32 %v353, 1.442695
  %v413 = vpow.pop %v412
  %v414 = vmul.f32 %v354, 1.442695
  %v415 = vpow.pop %v414
  %v416 = vmul.f32 %v355, 1.442695
  %v417 = vpow.pop %v416
  %v418 = vmul.f32 %v356, 1.442695
  %v419 = vpow.pop %v418
  %v420 = vmul.f32 %v357, 1.442695
  %v421 = vpow.pop %v420
  %v422 = vmul.f32 %v358, 1.442695
  %v423 = vpow.pop %v422
  %v424 = vmul.f32 %v359, 1.442695
  %v425 = vpow.pop %v424
  %v426 = vmul.f32 %v360, 1.442695
  %v427 = vpow.pop %v426
  %v428 = vmul.f32 %v361, 1.442695
  %v429 = vpow.pop %v428
  %v430 = vmul.f32 %v362, 1.442695
  %v431 = vpow.pop %v430
  %v432 = vmul.f32 %v363, 1.442695
  %v433 = vpow.pop %v432
  %v434 = vmul.f32 %v364, 1.442695
  %v435 = vpow.pop %v434
  %v436 = vmul.f32 %v365, 1.442695
  %v437 = vpow.pop %v436
  %v438 = vmul.f32 %v366, 1.442695
  %v439 = vpow.pop %v438
  %v440 = vmul.f32 %v367, 1.442695
  %v441 = vpow.pop %v440
  %v442 = vmul.f32 %v368, 1.442695
  %v443 = vpow.pop %v442
  %v444 = vmul.f32 %v369, 1.442695
  %v445 = vpow.pop %v444
  %v446 = vadd.f32 %v371, 1.0
  %v447 = vadd.f32 %v373, 1.0
  %v448 = vadd.f32 %v375, 1.0
  %v449 = vadd.f32 %v377, 1.0
  %v450 = vadd.f32 %v379, 1.0
  %v451 = vadd.f32 %v381, 1.0
  %v452 = vadd.f32 %v383, 1.0
  %v453 = vadd.f32 %v385, 1.0
  %v454 = vadd.f32 %v387, 1.0
  %v455 = vadd.f32 %v389, 1.0
  %v456 = vadd.f32 %v391, 1.0
  %v457 = vadd.f32 %v393, 1.0
  %v458 = vadd.f32 %v395, 1.0
  %v459 = vadd.f32 %v397, 1.0
  %v460 = vadd.f32 %v399, 1.0
  %v461 = vadd.f32 %v401, 1.0
  %v462 = vadd.f32 %v403, 1.0
  %v463 = vadd.f32 %v405, 1.0
  %v464 = vadd.f32 %v407, 1.0
  %v465 = vadd.f32 %v409, 1.0
  %v466 = vadd.f32 %v411, 1.0
  %v467 = vadd.f32 %v413, 1.0
  %v468 = vadd.f32 %v415, 1.0
  %v469 = vadd.f32 %v417, 1.0
  %v470 = vadd.f32 %v419, 1.0
  %v471 = vadd.f32 %v421, 1.0
  %v472 = vadd.f32 %v423, 1.0
  %v473 = vadd.f32 %v425, 1.0
  %v474 = vadd.f32 %v427, 1.0
  %v475 = vadd.f32 %v429, 1.0
  %v476 = vadd.f32 %v431, 1.0
  %v477 = vadd.f32 %v433, 1.0
  %v478 = vadd.f32 %v435, 1.0
  %v479 = vadd.f32 %v437, 1.0
  %v480 = vadd.f32 %v439, 1.0
  %v481 = vadd.f32 %v441, 1.0
  %v482 = vadd.f32 %v443, 1.0
  %v483 = vadd.f32 %v445, 1.0
  %v484 = vrcp.pop %v446
  %v485 = vmul.f32 %v446, %v484
  %v486 = vsub.f32 1.0, %v485
  %v487 = vmul.f32 %v484, %v486
  %v488 = vadd.f32 %v484, %v487
  %vm489 = vweird.f32 %v446
  %vm490 = vweird.f32 %v484
  %vm491 = vmor %vm489, %vm490
  %v492 = vsel %vm491, %v484, %v488
  %v493 = vand.u32 2147483647, %v446
  %vm494 = vcmp.eq.f32.partialorder %v493, 8.507059e+37
  %v495 = vand.u32 %v446, 2147483648
  %v496 = vor.u32 1.1754944e-38, %v495
  %v497 = vsel %vm494, %v496, %v492
  %v498 = vmul.f32 1.0, %v497
  %v499 = vrcp.pop %v447
  %v500 = vmul.f32 %v447, %v499
  %v501 = vsub.f32 1.0, %v500
  %v502 = vmul.f32 %v499, %v501
  %v503 = vadd.f32 %v499, %v502
  %vm504 = vweird.f32 %v447
  %vm505 = vweird.f32 %v499
  %vm506 = vmor %vm504, %vm505
  %v507 = vsel %vm506, %v499, %v503
  %v508 = vand.u32 2147483647, %v447
  %vm509 = vcmp.eq.f32.partialorder %v508, 8.507059e+37
  %v510 = vand.u32 %v447, 2147483648
  %v511 = vor.u32 1.1754944e-38, %v510
  %v512 = vsel %vm509, %v511, %v507
  %v513 = vmul.f32 1.0, %v512
  %v514 = vrcp.pop %v448
  %v515 = vmul.f32 %v448, %v514
  %v516 = vsub.f32 1.0, %v515
  %v517 = vmul.f32 %v514, %v516
  %v518 = vadd.f32 %v514, %v517
  %vm519 = vweird.f32 %v448
  %vm520 = vweird.f32 %v514
  %vm521 = vmor %vm519, %vm520
  %v522 = vsel %vm521, %v514, %v518
  %v523 = vand.u32 2147483647, %v448
  %vm524 = vcmp.eq.f32.partialorder %v523, 8.507059e+37
  %v525 = vand.u32 %v448, 2147483648
  %v526 = vor.u32 1.1754944e-38, %v525
  %v527 = vsel %vm524, %v526, %v522
  %v528 = vmul.f32 1.0, %v527
  %v529 = vrcp.pop %v449
  %v530 = vmul.f32 %v449, %v529
  %v531 = vsub.f32 1.0, %v530
  %v532 = vmul.f32 %v529, %v531
  %v533 = vadd.f32 %v529, %v532
  %vm534 = vweird.f32 %v449
  %vm535 = vweird.f32 %v529
  %vm536 = vmor %vm534, %vm535
  %v537 = vsel %vm536, %v529, %v533
  %v538 = vand.u32 2147483647, %v449
  %vm539 = vcmp.eq.f32.partialorder %v538, 8.507059e+37
  %v540 = vand.u32 %v449, 2147483648
  %v541 = vor.u32 1.1754944e-38, %v540
  %v542 = vsel %vm539, %v541, %v537
  %v543 = vmul.f32 1.0, %v542
  %v544 = vrcp.pop %v450
  %v545 = vmul.f32 %v450, %v544
  %v546 = vsub.f32 1.0, %v545
  %v547 = vmul.f32 %v544, %v546
  %v548 = vadd.f32 %v544, %v547
  %vm549 = vweird.f32 %v450
  %vm550 = vweird.f32 %v544
  %vm551 = vmor %vm549, %vm550
  %v552 = vsel %vm551, %v544, %v548
  %v553 = vand.u32 2147483647, %v450
  %vm554 = vcmp.eq.f32.partialorder %v553, 8.507059e+37
  %v555 = vand.u32 %v450, 2147483648
  %v556 = vor.u32 1.1754944e-38, %v555
  %v557 = vsel %vm554, %v556, %v552
  %v558 = vmul.f32 1.0, %v557
  %v559 = vrcp.pop %v451
  %v560 = vmul.f32 %v451, %v559
  %v561 = vsub.f32 1.0, %v560
  %v562 = vmul.f32 %v559, %v561
  %v563 = vadd.f32 %v559, %v562
  %vm564 = vweird.f32 %v451
  %vm565 = vweird.f32 %v559
  %vm566 = vmor %vm564, %vm565
  %v567 = vsel %vm566, %v559, %v563
  %v568 = vand.u32 2147483647, %v451
  %vm569 = vcmp.eq.f32.partialorder %v568, 8.507059e+37
  %v570 = vand.u32 %v451, 2147483648
  %v571 = vor.u32 1.1754944e-38, %v570
  %v572 = vsel %vm569, %v571, %v567
  %v573 = vmul.f32 1.0, %v572
  %v574 = vrcp.pop %v452
  %v575 = vmul.f32 %v452, %v574
  %v576 = vsub.f32 1.0, %v575
  %v577 = vmul.f32 %v574, %v576
  %v578 = vadd.f32 %v574, %v577
  %vm579 = vweird.f32 %v452
  %vm580 = vweird.f32 %v574
  %vm581 = vmor %vm579, %vm580
  %v582 = vsel %vm581, %v574, %v578
  %v583 = vand.u32 2147483647, %v452
  %vm584 = vcmp.eq.f32.partialorder %v583, 8.507059e+37
  %v585 = vand.u32 %v452, 2147483648
  %v586 = vor.u32 1.1754944e-38, %v585
  %v587 = vsel %vm584, %v586, %v582
  %v588 = vmul.f32 1.0, %v587
  %v589 = vrcp.pop %v453
  %v590 = vmul.f32 %v453, %v589
  %v591 = vsub.f32 1.0, %v590
  %v592 = vmul.f32 %v589, %v591
  %v593 = vadd.f32 %v589, %v592
  %vm594 = vweird.f32 %v453
  %vm595 = vweird.f32 %v589
  %vm596 = vmor %vm594, %vm595
  %v597 = vsel %vm596, %v589, %v593
  %v598 = vand.u32 2147483647, %v453
  %vm599 = vcmp.eq.f32.partialorder %v598, 8.507059e+37
  %v600 = vand.u32 %v453, 2147483648
  %v601 = vor.u32 1.1754944e-38, %v600
  %v602 = vsel %vm599, %v601, %v597
  %v603 = vmul.f32 1.0, %v602
  %v604 = vrcp.pop %v454
  %v605 = vmul.f32 %v454, %v604
  %v606 = vsub.f32 1.0, %v605
  %v607 = vmul.f32 %v604, %v606
  %v608 = vadd.f32 %v604, %v607
  %vm609 = vweird.f32 %v454
  %vm610 = vweird.f32 %v604
  %vm611 = vmor %vm609, %vm610
  %v612 = vsel %vm611, %v604, %v608
  %v613 = vand.u32 2147483647, %v454
  %vm614 = vcmp.eq.f32.partialorder %v613, 8.507059e+37
  %v615 = vand.u32 %v454, 2147483648
  %v616 = vor.u32 1.1754944e-38, %v615
  %v617 = vsel %vm614, %v616, %v612
  %v618 = vmul.f32 1.0, %v617
  %v619 = vrcp.pop %v455
  %v620 = vmul.f32 %v455, %v619
  %v621 = vsub.f32 1.0, %v620
  %v622 = vmul.f32 %v619, %v621
  %v623 = vadd.f32 %v619, %v622
  %vm624 = vweird.f32 %v455
  %vm625 = vweird.f32 %v619
  %vm626 = vmor %vm624, %vm625
  %v627 = vsel %vm626, %v619, %v623
  %v628 = vand.u32 2147483647, %v455
  %vm629 = vcmp.eq.f32.partialorder %v628, 8.507059e+37
  %v630 = vand.u32 %v455, 2147483648
  %v631 = vor.u32 1.1754944e-38, %v630
  %v632 = vsel %vm629, %v631, %v627
  %v633 = vmul.f32 1.0, %v632
  %v634 = vrcp.pop %v456
  %v635 = vmul.f32 %v456, %v634
  %v636 = vsub.f32 1.0, %v635
  %v637 = vmul.f32 %v634, %v636
  %v638 = vadd.f32 %v634, %v637
  %vm639 = vweird.f32 %v456
  %vm640 = vweird.f32 %v634
  %vm641 = vmor %vm639, %vm640
  %v642 = vsel %vm641, %v634, %v638
  %v643 = vand.u32 2147483647, %v456
  %vm644 = vcmp.eq.f32.partialorder %v643, 8.507059e+37
  %v645 = vand.u32 %v456, 2147483648
  %v646 = vor.u32 1.1754944e-38, %v645
  %v647 = vsel %vm644, %v646, %v642
  %v648 = vmul.f32 1.0, %v647
  %v649 = vrcp.pop %v457
  %v650 = vmul.f32 %v457, %v649
  %v651 = vsub.f32 1.0, %v650
  %v652 = vmul.f32 %v649, %v651
  %v653 = vadd.f32 %v649, %v652
  %vm654 = vweird.f32 %v457
  %vm655 = vweird.f32 %v649
  %vm656 = vmor %vm654, %vm655
  %v657 = vsel %vm656, %v649, %v653
  %v658 = vand.u32 2147483647, %v457
  %vm659 = vcmp.eq.f32.partialorder %v658, 8.507059e+37
  %v660 = vand.u32 %v457, 2147483648
  %v661 = vor.u32 1.1754944e-38, %v660
  %v662 = vsel %vm659, %v661, %v657
  %v663 = vmul.f32 1.0, %v662
  %v664 = vrcp.pop %v458
  %v665 = vmul.f32 %v458, %v664
  %v666 = vsub.f32 1.0, %v665
  %v667 = vmul.f32 %v664, %v666
  %v668 = vadd.f32 %v664, %v667
  %vm669 = vweird.f32 %v458
  %vm670 = vweird.f32 %v664
  %vm671 = vmor %vm669, %vm670
  %v672 = vsel %vm671, %v664, %v668
  %v673 = vand.u32 2147483647, %v458
  %vm674 = vcmp.eq.f32.partialorder %v673, 8.507059e+37
  %v675 = vand.u32 %v458, 2147483648
  %v676 = vor.u32 1.1754944e-38, %v675
  %v677 = vsel %vm674, %v676, %v672
  %v678 = vmul.f32 1.0, %v677
  %v679 = vrcp.pop %v459
  %v680 = vmul.f32 %v459, %v679
  %v681 = vsub.f32 1.0, %v680
  %v682 = vmul.f32 %v679, %v681
  %v683 = vadd.f32 %v679, %v682
  %vm684 = vweird.f32 %v459
  %vm685 = vweird.f32 %v679
  %vm686 = vmor %vm684, %vm685
  %v687 = vsel %vm686, %v679, %v683
  %v688 = vand.u32 2147483647, %v459
  %vm689 = vcmp.eq.f32.partialorder %v688, 8.507059e+37
  %v690 = vand.u32 %v459, 2147483648
  %v691 = vor.u32 1.1754944e-38, %v690
  %v692 = vsel %vm689, %v691, %v687
  %v693 = vmul.f32 1.0, %v692
  %v694 = vrcp.pop %v460
  %v695 = vmul.f32 %v460, %v694
  %v696 = vsub.f32 1.0, %v695
  %v697 = vmul.f32 %v694, %v696
  %v698 = vadd.f32 %v694, %v697
  %vm699 = vweird.f32 %v460
  %vm700 = vweird.f32 %v694
  %vm701 = vmor %vm699, %vm700
  %v702 = vsel %vm701, %v694, %v698
  %v703 = vand.u32 2147483647, %v460
  %vm704 = vcmp.eq.f32.partialorder %v703, 8.507059e+37
  %v705 = vand.u32 %v460, 2147483648
  %v706 = vor.u32 1.1754944e-38, %v705
  %v707 = vsel %vm704, %v706, %v702
  %v708 = vmul.f32 1.0, %v707
  %v709 = vrcp.pop %v461
  %v710 = vmul.f32 %v461, %v709
  %v711 = vsub.f32 1.0, %v710
  %v712 = vmul.f32 %v709, %v711
  %v713 = vadd.f32 %v709, %v712
  %vm714 = vweird.f32 %v461
  %vm715 = vweird.f32 %v709
  %vm716 = vmor %vm714, %vm715
  %v717 = vsel %vm716, %v709, %v713
  %v718 = vand.u32 2147483647, %v461
  %vm719 = vcmp.eq.f32.partialorder %v718, 8.507059e+37
  %v720 = vand.u32 %v461, 2147483648
  %v721 = vor.u32 1.1754944e-38, %v720
  %v722 = vsel %vm719, %v721, %v717
  %v723 = vmul.f32 1.0, %v722
  %v724 = vrcp.pop %v462
  %v725 = vmul.f32 %v462, %v724
  %v726 = vsub.f32 1.0, %v725
  %v727 = vmul.f32 %v724, %v726
  %v728 = vadd.f32 %v724, %v727
  %vm729 = vweird.f32 %v462
  %vm730 = vweird.f32 %v724
  %vm731 = vmor %vm729, %vm730
  %v732 = vsel %vm731, %v724, %v728
  %v733 = vand.u32 2147483647, %v462
  %vm734 = vcmp.eq.f32.partialorder %v733, 8.507059e+37
  %v735 = vand.u32 %v462, 2147483648
  %v736 = vor.u32 1.1754944e-38, %v735
  %v737 = vsel %vm734, %v736, %v732
  %v738 = vmul.f32 1.0, %v737
  %v739 = vrcp.pop %v463
  %v740 = vmul.f32 %v463, %v739
  %v741 = vsub.f32 1.0, %v740
  %v742 = vmul.f32 %v739, %v741
  %v743 = vadd.f32 %v739, %v742
  %vm744 = vweird.f32 %v463
  %vm745 = vweird.f32 %v739
  %vm746 = vmor %vm744, %vm745
  %v747 = vsel %vm746, %v739, %v743
  %v748 = vand.u32 2147483647, %v463
  %vm749 = vcmp.eq.f32.partialorder %v748, 8.507059e+37
  %v750 = vand.u32 %v463, 2147483648
  %v751 = vor.u32 1.1754944e-38, %v750
  %v752 = vsel %vm749, %v751, %v747
  %v753 = vmul.f32 1.0, %v752
  %v754 = vrcp.pop %v464
  %v755 = vmul.f32 %v464, %v754
  %v756 = vsub.f32 1.0, %v755
  %v757 = vmul.f32 %v754, %v756
  %v758 = vadd.f32 %v754, %v757
  %vm759 = vweird.f32 %v464
  %vm760 = vweird.f32 %v754
  %vm761 = vmor %vm759, %vm760
  %v762 = vsel %vm761, %v754, %v758
  %v763 = vand.u32 2147483647, %v464
  %vm764 = vcmp.eq.f32.partialorder %v763, 8.507059e+37
  %v765 = vand.u32 %v464, 2147483648
  %v766 = vor.u32 1.1754944e-38, %v765
  %v767 = vsel %vm764, %v766, %v762
  %v768 = vmul.f32 1.0, %v767
  %v769 = vrcp.pop %v465
  %v770 = vmul.f32 %v465, %v769
  %v771 = vsub.f32 1.0, %v770
  %v772 = vmul.f32 %v769, %v771
  %v773 = vadd.f32 %v769, %v772
  %vm774 = vweird.f32 %v465
  %vm775 = vweird.f32 %v769
  %vm776 = vmor %vm774, %vm775
  %v777 = vsel %vm776, %v769, %v773
  %v778 = vand.u32 2147483647, %v465
  %vm779 = vcmp.eq.f32.partialorder %v778, 8.507059e+37
  %v780 = vand.u32 %v465, 2147483648
  %v781 = vor.u32 1.1754944e-38, %v780
  %v782 = vsel %vm779, %v781, %v777
  %v783 = vmul.f32 1.0, %v782
  %v784 = vrcp.pop %v466
  %v785 = vmul.f32 %v466, %v784
  %v786 = vsub.f32 1.0, %v785
  %v787 = vmul.f32 %v784, %v786
  %v788 = vadd.f32 %v784, %v787
  %vm789 = vweird.f32 %v466
  %vm790 = vweird.f32 %v784
  %vm791 = vmor %vm789, %vm790
  %v792 = vsel %vm791, %v784, %v788
  %v793 = vand.u32 2147483647, %v466
  %vm794 = vcmp.eq.f32.partialorder %v793, 8.507059e+37
  %v795 = vand.u32 %v466, 2147483648
  %v796 = vor.u32 1.1754944e-38, %v795
  %v797 = vsel %vm794, %v796, %v792
  %v798 = vmul.f32 1.0, %v797
  %v799 = vrcp.pop %v467
  %v800 = vmul.f32 %v467, %v799
  %v801 = vsub.f32 1.0, %v800
  %v802 = vmul.f32 %v799, %v801
  %v803 = vadd.f32 %v799, %v802
  %vm804 = vweird.f32 %v467
  %vm805 = vweird.f32 %v799
  %vm806 = vmor %vm804, %vm805
  %v807 = vsel %vm806, %v799, %v803
  %v808 = vand.u32 2147483647, %v467
  %vm809 = vcmp.eq.f32.partialorder %v808, 8.507059e+37
  %v810 = vand.u32 %v467, 2147483648
  %v811 = vor.u32 1.1754944e-38, %v810
  %v812 = vsel %vm809, %v811, %v807
  %v813 = vmul.f32 1.0, %v812
  %v814 = vrcp.pop %v468
  %v815 = vmul.f32 %v468, %v814
  %v816 = vsub.f32 1.0, %v815
  %v817 = vmul.f32 %v814, %v816
  %v818 = vadd.f32 %v814, %v817
  %vm819 = vweird.f32 %v468
  %vm820 = vweird.f32 %v814
  %vm821 = vmor %vm819, %vm820
  %v822 = vsel %vm821, %v814, %v818
  %v823 = vand.u32 2147483647, %v468
  %vm824 = vcmp.eq.f32.partialorder %v823, 8.507059e+37
  %v825 = vand.u32 %v468, 2147483648
  %v826 = vor.u32 1.1754944e-38, %v825
  %v827 = vsel %vm824, %v826, %v822
  %v828 = vmul.f32 1.0, %v827
  %v829 = vrcp.pop %v469
  %v830 = vmul.f32 %v469, %v829
  %v831 = vsub.f32 1.0, %v830
  %v832 = vmul.f32 %v829, %v831
  %v833 = vadd.f32 %v829, %v832
  %vm834 = vweird.f32 %v469
  %vm835 = vweird.f32 %v829
  %vm836 = vmor %vm834, %vm835
  %v837 = vsel %vm836, %v829, %v833
  %v838 = vand.u32 2147483647, %v469
  %vm839 = vcmp.eq.f32.partialorder %v838, 8.507059e+37
  %v840 = vand.u32 %v469, 2147483648
  %v841 = vor.u32 1.1754944e-38, %v840
  %v842 = vsel %vm839, %v841, %v837
  %v843 = vmul.f32 1.0, %v842
  %v844 = vrcp.pop %v470
  %v845 = vmul.f32 %v470, %v844
  %v846 = vsub.f32 1.0, %v845
  %v847 = vmul.f32 %v844, %v846
  %v848 = vadd.f32 %v844, %v847
  %vm849 = vweird.f32 %v470
  %vm850 = vweird.f32 %v844
  %vm851 = vmor %vm849, %vm850
  %v852 = vsel %vm851, %v844, %v848
  %v853 = vand.u32 2147483647, %v470
  %vm854 = vcmp.eq.f32.partialorder %v853, 8.507059e+37
  %v855 = vand.u32 %v470, 2147483648
  %v856 = vor.u32 1.1754944e-38, %v855
  %v857 = vsel %vm854, %v856, %v852
  %v858 = vmul.f32 1.0, %v857
  %v859 = vrcp.pop %v471
  %v860 = vmul.f32 %v471, %v859
  %v861 = vsub.f32 1.0, %v860
  %v862 = vmul.f32 %v859, %v861
  %v863 = vadd.f32 %v859, %v862
  %vm864 = vweird.f32 %v471
  %vm865 = vweird.f32 %v859
  %vm866 = vmor %vm864, %vm865
  %v867 = vsel %vm866, %v859, %v863
  %v868 = vand.u32 2147483647, %v471
  %vm869 = vcmp.eq.f32.partialorder %v868, 8.507059e+37
  %v870 = vand.u32 %v471, 2147483648
  %v871 = vor.u32 1.1754944e-38, %v870
  %v872 = vsel %vm869, %v871, %v867
  %v873 = vmul.f32 1.0, %v872
  %v874 = vrcp.pop %v472
  %v875 = vmul.f32 %v472, %v874
  %v876 = vsub.f32 1.0, %v875
  %v877 = vmul.f32 %v874, %v876
  %v878 = vadd.f32 %v874, %v877
  %vm879 = vweird.f32 %v472
  %vm880 = vweird.f32 %v874
  %vm881 = vmor %vm879, %vm880
  %v882 = vsel %vm881, %v874, %v878
  %v883 = vand.u32 2147483647, %v472
  %vm884 = vcmp.eq.f32.partialorder %v883, 8.507059e+37
  %v885 = vand.u32 %v472, 2147483648
  %v886 = vor.u32 1.1754944e-38, %v885
  %v887 = vsel %vm884, %v886, %v882
  %v888 = vmul.f32 1.0, %v887
  %v889 = vrcp.pop %v473
  %v890 = vmul.f32 %v473, %v889
  %v891 = vsub.f32 1.0, %v890
  %v892 = vmul.f32 %v889, %v891
  %v893 = vadd.f32 %v889, %v892
  %vm894 = vweird.f32 %v473
  %vm895 = vweird.f32 %v889
  %vm896 = vmor %vm894, %vm895
  %v897 = vsel %vm896, %v889, %v893
  %v898 = vand.u32 2147483647, %v473
  %vm899 = vcmp.eq.f32.partialorder %v898, 8.507059e+37
  %v900 = vand.u32 %v473, 2147483648
  %v901 = vor.u32 1.1754944e-38, %v900
  %v902 = vsel %vm899, %v901, %v897
  %v903 = vmul.f32 1.0, %v902
  %v904 = vrcp.pop %v474
  %v905 = vmul.f32 %v474, %v904
  %v906 = vsub.f32 1.0, %v905
  %v907 = vmul.f32 %v904, %v906
  %v908 = vadd.f32 %v904, %v907
  %vm909 = vweird.f32 %v474
  %vm910 = vweird.f32 %v904
  %vm911 = vmor %vm909, %vm910
  %v912 = vsel %vm911, %v904, %v908
  %v913 = vand.u32 2147483647, %v474
  %vm914 = vcmp.eq.f32.partialorder %v913, 8.507059e+37
  %v915 = vand.u32 %v474, 2147483648
  %v916 = vor.u32 1.1754944e-38, %v915
  %v917 = vsel %vm914, %v916, %v912
  %v918 = vmul.f32 1.0, %v917
  %v919 = vrcp.pop %v475
  %v920 = vmul.f32 %v475, %v919
  %v921 = vsub.f32 1.0, %v920
  %v922 = vmul.f32 %v919, %v921
  %v923 = vadd.f32 %v919, %v922
  %vm924 = vweird.f32 %v475
  %vm925 = vweird.f32 %v919
  %vm926 = vmor %vm924, %vm925
  %v927 = vsel %vm926, %v919, %v923
  %v928 = vand.u32 2147483647, %v475
  %vm929 = vcmp.eq.f32.partialorder %v928, 8.507059e+37
  %v930 = vand.u32 %v475, 2147483648
  %v931 = vor.u32 1.1754944e-38, %v930
  %v932 = vsel %vm929, %v931, %v927
  %v933 = vmul.f32 1.0, %v932
  %v934 = vrcp.pop %v476
  %v935 = vmul.f32 %v476, %v934
  %v936 = vsub.f32 1.0, %v935
  %v937 = vmul.f32 %v934, %v936
  %v938 = vadd.f32 %v934, %v937
  %vm939 = vweird.f32 %v476
  %vm940 = vweird.f32 %v934
  %vm941 = vmor %vm939, %vm940
  %v942 = vsel %vm941, %v934, %v938
  %v943 = vand.u32 2147483647, %v476
  %vm944 = vcmp.eq.f32.partialorder %v943, 8.507059e+37
  %v945 = vand.u32 %v476, 2147483648
  %v946 = vor.u32 1.1754944e-38, %v945
  %v947 = vsel %vm944, %v946, %v942
  %v948 = vmul.f32 1.0, %v947
  %v949 = vrcp.pop %v477
  %v950 = vmul.f32 %v477, %v949
  %v951 = vsub.f32 1.0, %v950
  %v952 = vmul.f32 %v949, %v951
  %v953 = vadd.f32 %v949, %v952
  %vm954 = vweird.f32 %v477
  %vm955 = vweird.f32 %v949
  %vm956 = vmor %vm954, %vm955
  %v957 = vsel %vm956, %v949, %v953
  %v958 = vand.u32 2147483647, %v477
  %vm959 = vcmp.eq.f32.partialorder %v958, 8.507059e+37
  %v960 = vand.u32 %v477, 2147483648
  %v961 = vor.u32 1.1754944e-38, %v960
  %v962 = vsel %vm959, %v961, %v957
  %v963 = vmul.f32 1.0, %v962
  %v964 = vrcp.pop %v478
  %v965 = vmul.f32 %v478, %v964
  %v966 = vsub.f32 1.0, %v965
  %v967 = vmul.f32 %v964, %v966
  %v968 = vadd.f32 %v964, %v967
  %vm969 = vweird.f32 %v478
  %vm970 = vweird.f32 %v964
  %vm971 = vmor %vm969, %vm970
  %v972 = vsel %vm971, %v964, %v968
  %v973 = vand.u32 2147483647, %v478
  %vm974 = vcmp.eq.f32.partialorder %v973, 8.507059e+37
  %v975 = vand.u32 %v478, 2147483648
  %v976 = vor.u32 1.1754944e-38, %v975
  %v977 = vsel %vm974, %v976, %v972
  %v978 = vmul.f32 1.0, %v977
  %v979 = vrcp.pop %v479
  %v980 = vmul.f32 %v479, %v979
  %v981 = vsub.f32 1.0, %v980
  %v982 = vmul.f32 %v979, %v981
  %v983 = vadd.f32 %v979, %v982
  %vm984 = vweird.f32 %v479
  %vm985 = vweird.f32 %v979
  %vm986 = vmor %vm984, %vm985
  %v987 = vsel %vm986, %v979, %v983
  %v988 = vand.u32 2147483647, %v479
  %vm989 = vcmp.eq.f32.partialorder %v988, 8.507059e+37
  %v990 = vand.u32 %v479, 2147483648
  %v991 = vor.u32 1.1754944e-38, %v990
  %v992 = vsel %vm989, %v991, %v987
  %v993 = vmul.f32 1.0, %v992
  %v994 = vrcp.pop %v480
  %v995 = vmul.f32 %v480, %v994
  %v996 = vsub.f32 1.0, %v995
  %v997 = vmul.f32 %v994, %v996
  %v998 = vadd.f32 %v994, %v997
  %vm999 = vweird.f32 %v480
  %vm1000 = vweird.f32 %v994
  %vm1001 = vmor %vm999, %vm1000
  %v1002 = vsel %vm1001, %v994, %v998
  %v1003 = vand.u32 2147483647, %v480
  %vm1004 = vcmp.eq.f32.partialorder %v1003, 8.507059e+37
  %v1005 = vand.u32 %v480, 2147483648
  %v1006 = vor.u32 1.1754944e-38, %v1005
  %v1007 = vsel %vm1004, %v1006, %v1002
  %v1008 = vmul.f32 1.0, %v1007
  %v1009 = vrcp.pop %v481
  %v1010 = vmul.f32 %v481, %v1009
  %v1011 = vsub.f32 1.0, %v1010
  %v1012 = vmul.f32 %v1009, %v1011
  %v1013 = vadd.f32 %v1009, %v1012
  %vm1014 = vweird.f32 %v481
  %vm1015 = vweird.f32 %v1009
  %vm1016 = vmor %vm1014, %vm1015
  %v1017 = vsel %vm1016, %v1009, %v1013
  %v1018 = vand.u32 2147483647, %v481
  %vm1019 = vcmp.eq.f32.partialorder %v1018, 8.507059e+37
  %v1020 = vand.u32 %v481, 2147483648
  %v1021 = vor.u32 1.1754944e-38, %v1020
  %v1022 = vsel %vm1019, %v1021, %v1017
  %v1023 = vmul.f32 1.0, %v1022
  %v1024 = vrcp.pop %v482
  %v1025 = vmul.f32 %v482, %v1024
  %v1026 = vsub.f32 1.0, %v1025
  %v1027 = vmul.f32 %v1024, %v1026
  %v1028 = vadd.f32 %v1024, %v1027
  %vm1029 = vweird.f32 %v482
  %vm1030 = vweird.f32 %v1024
  %vm1031 = vmor %vm1029, %vm1030
  %v1032 = vsel %vm1031, %v1024, %v1028
  %v1033 = vand.u32 2147483647, %v482
  %vm1034 = vcmp.eq.f32.partialorder %v1033, 8.507059e+37
  %v1035 = vand.u32 %v482, 2147483648
  %v1036 = vor.u32 1.1754944e-38, %v1035
  %v1037 = vsel %vm1034, %v1036, %v1032
  %v1038 = vmul.f32 1.0, %v1037
  %v1039 = vrcp.pop %v483
  %v1040 = vmul.f32 %v483, %v1039
  %v1041 = vsub.f32 1.0, %v1040
  %v1042 = vmul.f32 %v1039, %v1041
  %v1043 = vadd.f32 %v1039, %v1042
  %vm1044 = vweird.f32 %v483
  %vm1045 = vweird.f32 %v1039
  %vm1046 = vmor %vm1044, %vm1045
  %v1047 = vsel %vm1046, %v1039, %v1043
  %v1048 = vand.u32 2147483647, %v483
  %vm1049 = vcmp.eq.f32.partialorder %v1048, 8.507059e+37
  %v1050 = vand.u32 %v483, 2147483648
  %v1051 = vor.u32 1.1754944e-38, %v1050
  %v1052 = vsel %vm1049, %v1051, %v1047
  %v1053 = vmul.f32 1.0, %v1052
  %v1054 = vmul.f32 %v238, %v498
  %v1055 = vmul.f32 %v240, %v513
  %v1056 = vmul.f32 %v243, %v528
  %v1057 = vmul.f32 %v245, %v543
  %v1058 = vmul.f32 %v248, %v558
  %v1059 = vmul.f32 %v250, %v573
  %v1060 = vmul.f32 %v253, %v588
  %v1061 = vmul.f32 %v255, %v603
  %v1062 = vmul.f32 %v258, %v618
  %v1063 = vmul.f32 %v260, %v633
  %v1064 = vmul.f32 %v263, %v648
  %v1065 = vmul.f32 %v265, %v663
  %v1066 = vmul.f32 %v268, %v678
  %v1067 = vmul.f32 %v270, %v693
  %v1068 = vmul.f32 %v273, %v708
  %v1069 = vmul.f32 %v275, %v723
  %v1070 = vmul.f32 %v278, %v738
  %v1071 = vmul.f32 %v280, %v753
  %v1072 = vmul.f32 %v283, %v768
  %v1073 = vmul.f32 %v285, %v783
  %v1074 = vmul.f32 %v288, %v798
  %v1075 = vmul.f32 %v290, %v813
  %v1076 = vmul.f32 %v293, %v828
  %v1077 = vmul.f32 %v295, %v843
  %v1078 = vmul.f32 %v298, %v858
  %v1079 = vmul.f32 %v300, %v873
  %v1080 = vmul.f32 %v303, %v888
  %v1081 = vmul.f32 %v305, %v903
  %v1082 = vmul.f32 %v308, %v918
  %v1083 = vmul.f32 %v310, %v933
  %v1084 = vmul.f32 %v313, %v948
  %v1085 = vmul.f32 %v315, %v963
  %v1086 = vmul.f32 %v318, %v978
  %v1087 = vmul.f32 %v320, %v993
  %v1088 = vmul.f32 %v323, %v1008
  %v1089 = vmul.f32 %v325, %v1023
  %v1090 = vmul.f32 %v328, %v1038
  %v1091 = vmul.f32 %v330, %v1053
  %v1092 = vpack.c.bf16 %v1055, %v1054
  %v1093 = vpack.c.bf16 %v1057, %v1056
  %v1094 = vpack.c.bf16 %v1059, %v1058
  %v1095 = vpack.c.bf16 %v1061, %v1060
  %v1096 = vpack.c.bf16 %v1063, %v1062
  %v1097 = vpack.c.bf16 %v1065, %v1064
  %v1098 = vpack.c.bf16 %v1067, %v1066
  %v1099 = vpack.c.bf16 %v1069, %v1068
  %v1100 = vpack.c.bf16 %v1071, %v1070
  %v1101 = vpack.c.bf16 %v1073, %v1072
  %v1102 = vpack.c.bf16 %v1075, %v1074
  %v1103 = vpack.c.bf16 %v1077, %v1076
  %v1104 = vpack.c.bf16 %v1079, %v1078
  %v1105 = vpack.c.bf16 %v1081, %v1080
  %v1106 = vpack.c.bf16 %v1083, %v1082
  %v1107 = vpack.c.bf16 %v1085, %v1084
  %v1108 = vpack.c.bf16 %v1087, %v1086
  %v1109 = vpack.c.bf16 %v1089, %v1088
  %v1110 = vpack.c.bf16 %v1091, %v1090
  %v1111 = vld [vmem:[%s2] sm:$0xf]
  %v1112 = vld [vmem:[%s2 + $0x4] sm:$0xf]
  %v1113 = vld [vmem:[%s2 + $0x8] sm:$0xf]
  %v1114 = vld [vmem:[%s2 + $0xc] sm:$0xf]
  %v1115 = vld [vmem:[%s2 + $0x10] sm:$0xf]
  %v1116 = vld [vmem:[%s2 + $0x14] sm:$0xf]
  %v1117 = vld [vmem:[%s2 + $0x18] sm:$0xf]
  %v1118 = vld [vmem:[%s2 + $0x1c] sm:$0xf]
  %v1127 = vunpack.c.l.b16 %v1111
  %v1128 = vunpack.c.l.b16 %v1112
  %v1129 = vunpack.c.l.b16 %v1113
  %v1130 = vunpack.c.l.b16 %v1114
  %v1131 = vunpack.c.l.b16 %v1115
  %v1132 = vunpack.c.l.b16 %v1116
  %v1133 = vunpack.c.l.b16 %v1117
  %v1134 = vunpack.c.l.b16 %v1118
  %v1135 = vpack.c.b16 %v1128, %v1127
  %v1136 = vpack.c.b16 %v1130, %v1129
  %v1137 = vpack.c.b16 %v1132, %v1131
  %v1138 = vpack.c.b16 %v1134, %v1133
  %vm1143 = vcmask 523264
  %v1145 = vsel %vm1143, %v1092, 0
  %v1148 = vsel %vm1143, %v1093, 0
  %v1151 = vsel %vm1143, %v1094, 0
  %v1154 = vsel %vm1143, %v1095, 0
  %v1157 = vsel %vm1143, %v1096, 0
  %v1160 = vsel %vm1143, %v1097, 0
  %v1163 = vsel %vm1143, %v1098, 0
  %v1166 = vsel %vm1143, %v1099, 0
  %v1169 = vsel %vm1143, %v1100, 0
  %v1172 = vsel %vm1143, %v1101, 0
  %v1175 = vsel %vm1143, %v1102, 0
  %v1178 = vsel %vm1143, %v1103, 0
  %v1181 = vsel %vm1143, %v1104, 0
  %v1184 = vsel %vm1143, %v1105, 0
  %v1187 = vsel %vm1143, %v1106, 0
  %v1190 = vsel %vm1143, %v1107, 0
  %v1193 = vsel %vm1143, %v1108, 0
  %v1196 = vsel %vm1143, %v1109, 0
  %v1199 = vsel %vm1143, %v1110, 0
  %1201 = vmatpush.bf16.msra.mxu0 0
  %1202 = vmatpush.bf16.msra.mxu0 0
  %1203 = vmatpush.bf16.msra.mxu0 0
  %1204 = vmatpush.bf16.msra.mxu0 0
  %1205 = vmatpush.bf16.msra.mxu0 %v1138
  %1206 = vmatpush.bf16.msra.mxu0 %v1137
  %1207 = vmatpush.bf16.msra.mxu0 %v1136
  %1208 = vmatpush.bf16.msra.mxu0 %v1135
  %1209 = vmatmul.bf16.gmra.mxu0 %v1145
  %v1210 = vpop.f32.mrf.mxu0
  %v1211 = vadd.f32 0.0, %v1210
  %v1212 = vpop.f32.mrf.mxu0
  %v1213 = vadd.f32 0.0, %v1212
  %1214 = vmatmul.bf16.gmra.mxu0 %v1148
  %v1215 = vpop.f32.mrf.mxu0
  %v1216 = vadd.f32 0.0, %v1215
  %v1217 = vpop.f32.mrf.mxu0
  %v1218 = vadd.f32 0.0, %v1217
  %1219 = vmatmul.bf16.gmra.mxu0 %v1151
  %v1220 = vpop.f32.mrf.mxu0
  %v1221 = vadd.f32 0.0, %v1220
  %v1222 = vpop.f32.mrf.mxu0
  %v1223 = vadd.f32 0.0, %v1222
  %1224 = vmatmul.bf16.gmra.mxu0 %v1154
  %v1225 = vpop.f32.mrf.mxu0
  %v1226 = vadd.f32 0.0, %v1225
  %v1227 = vpop.f32.mrf.mxu0
  %v1228 = vadd.f32 0.0, %v1227
  %1229 = vmatmul.bf16.gmra.mxu0 %v1157
  %v1230 = vpop.f32.mrf.mxu0
  %v1231 = vadd.f32 0.0, %v1230
  %v1232 = vpop.f32.mrf.mxu0
  %v1233 = vadd.f32 0.0, %v1232
  %1234 = vmatmul.bf16.gmra.mxu0 %v1160
  %v1235 = vpop.f32.mrf.mxu0
  %v1236 = vadd.f32 0.0, %v1235
  %v1237 = vpop.f32.mrf.mxu0
  %v1238 = vadd.f32 0.0, %v1237
  %1239 = vmatmul.bf16.gmra.mxu0 %v1163
  %v1240 = vpop.f32.mrf.mxu0
  %v1241 = vadd.f32 0.0, %v1240
  %v1242 = vpop.f32.mrf.mxu0
  %v1243 = vadd.f32 0.0, %v1242
  %1244 = vmatmul.bf16.gmra.mxu0 %v1166
  %v1245 = vpop.f32.mrf.mxu0
  %v1246 = vadd.f32 0.0, %v1245
  %v1247 = vpop.f32.mrf.mxu0
  %v1248 = vadd.f32 0.0, %v1247
  %1249 = vmatmul.bf16.gmra.mxu0 %v1169
  %v1250 = vpop.f32.mrf.mxu0
  %v1251 = vadd.f32 0.0, %v1250
  %v1252 = vpop.f32.mrf.mxu0
  %v1253 = vadd.f32 0.0, %v1252
  %1254 = vmatmul.bf16.gmra.mxu0 %v1172
  %v1255 = vpop.f32.mrf.mxu0
  %v1256 = vadd.f32 0.0, %v1255
  %v1257 = vpop.f32.mrf.mxu0
  %v1258 = vadd.f32 0.0, %v1257
  %1259 = vmatmul.bf16.gmra.mxu0 %v1175
  %v1260 = vpop.f32.mrf.mxu0
  %v1261 = vadd.f32 0.0, %v1260
  %v1262 = vpop.f32.mrf.mxu0
  %v1263 = vadd.f32 0.0, %v1262
  %1264 = vmatmul.bf16.gmra.mxu0 %v1178
  %v1265 = vpop.f32.mrf.mxu0
  %v1266 = vadd.f32 0.0, %v1265
  %v1267 = vpop.f32.mrf.mxu0
  %v1268 = vadd.f32 0.0, %v1267
  %1269 = vmatmul.bf16.gmra.mxu0 %v1181
  %v1270 = vpop.f32.mrf.mxu0
  %v1271 = vadd.f32 0.0, %v1270
  %v1272 = vpop.f32.mrf.mxu0
  %v1273 = vadd.f32 0.0, %v1272
  %1274 = vmatmul.bf16.gmra.mxu0 %v1184
  %v1275 = vpop.f32.mrf.mxu0
  %v1276 = vadd.f32 0.0, %v1275
  %v1277 = vpop.f32.mrf.mxu0
  %v1278 = vadd.f32 0.0, %v1277
  %1279 = vmatmul.bf16.gmra.mxu0 %v1187
  %v1280 = vpop.f32.mrf.mxu0
  %v1281 = vadd.f32 0.0, %v1280
  %v1282 = vpop.f32.mrf.mxu0
  %v1283 = vadd.f32 0.0, %v1282
  %1284 = vmatmul.bf16.gmra.mxu0 %v1190
  %v1285 = vpop.f32.mrf.mxu0
  %v1286 = vadd.f32 0.0, %v1285
  %v1287 = vpop.f32.mrf.mxu0
  %v1288 = vadd.f32 0.0, %v1287
  %1289 = vmatmul.bf16.gmra.mxu0 %v1193
  %v1290 = vpop.f32.mrf.mxu0
  %v1291 = vadd.f32 0.0, %v1290
  %v1292 = vpop.f32.mrf.mxu0
  %v1293 = vadd.f32 0.0, %v1292
  %1294 = vmatmul.bf16.gmra.mxu0 %v1196
  %v1295 = vpop.f32.mrf.mxu0
  %v1296 = vadd.f32 0.0, %v1295
  %v1297 = vpop.f32.mrf.mxu0
  %v1298 = vadd.f32 0.0, %v1297
  %1299 = vmatmul.bf16.gmra.mxu0 %v1199
  %v1300 = vpop.f32.mrf.mxu0
  %v1301 = vadd.f32 0.0, %v1300
  %v1302 = vpop.f32.mrf.mxu0
  %v1303 = vadd.f32 0.0, %v1302
  %1304 = vdwg.mxu0
  %1343 = vrot.lane.b32.xlu0 %v1211, 64
  %v1344 = vpop.permute.xlu0 %1343
  %1345 = vrot.lane.b32.xlu0 %v1213, 64
  %v1346 = vpop.permute.xlu0 %1345
  %1347 = vrot.lane.b32.xlu0 %v1216, 64
  %v1348 = vpop.permute.xlu0 %1347
  %1349 = vrot.lane.b32.xlu0 %v1218, 64
  %v1350 = vpop.permute.xlu0 %1349
  %1351 = vrot.lane.b32.xlu0 %v1221, 64
  %v1352 = vpop.permute.xlu0 %1351
  %1353 = vrot.lane.b32.xlu0 %v1223, 64
  %v1354 = vpop.permute.xlu0 %1353
  %1355 = vrot.lane.b32.xlu0 %v1226, 64
  %v1356 = vpop.permute.xlu0 %1355
  %1357 = vrot.lane.b32.xlu0 %v1228, 64
  %v1358 = vpop.permute.xlu0 %1357
  %1359 = vrot.lane.b32.xlu0 %v1231, 64
  %v1360 = vpop.permute.xlu0 %1359
  %1361 = vrot.lane.b32.xlu0 %v1233, 64
  %v1362 = vpop.permute.xlu0 %1361
  %1363 = vrot.lane.b32.xlu0 %v1236, 64
  %v1364 = vpop.permute.xlu0 %1363
  %1365 = vrot.lane.b32.xlu0 %v1238, 64
  %v1366 = vpop.permute.xlu0 %1365
  %1367 = vrot.lane.b32.xlu0 %v1241, 64
  %v1368 = vpop.permute.xlu0 %1367
  %1369 = vrot.lane.b32.xlu0 %v1243, 64
  %v1370 = vpop.permute.xlu0 %1369
  %1371 = vrot.lane.b32.xlu0 %v1246, 64
  %v1372 = vpop.permute.xlu0 %1371
  %1373 = vrot.lane.b32.xlu0 %v1248, 64
  %v1374 = vpop.permute.xlu0 %1373
  %1375 = vrot.lane.b32.xlu0 %v1251, 64
  %v1376 = vpop.permute.xlu0 %1375
  %1377 = vrot.lane.b32.xlu0 %v1253, 64
  %v1378 = vpop.permute.xlu0 %1377
  %1379 = vrot.lane.b32.xlu0 %v1256, 64
  %v1380 = vpop.permute.xlu0 %1379
  %1381 = vrot.lane.b32.xlu0 %v1258, 64
  %v1382 = vpop.permute.xlu0 %1381
  %1383 = vrot.lane.b32.xlu0 %v1261, 64
  %v1384 = vpop.permute.xlu0 %1383
  %1385 = vrot.lane.b32.xlu0 %v1263, 64
  %v1386 = vpop.permute.xlu0 %1385
  %1387 = vrot.lane.b32.xlu0 %v1266, 64
  %v1388 = vpop.permute.xlu0 %1387
  %1389 = vrot.lane.b32.xlu0 %v1268, 64
  %v1390 = vpop.permute.xlu0 %1389
  %1391 = vrot.lane.b32.xlu0 %v1271, 64
  %v1392 = vpop.permute.xlu0 %1391
  %1393 = vrot.lane.b32.xlu0 %v1273, 64
  %v1394 = vpop.permute.xlu0 %1393
  %1395 = vrot.lane.b32.xlu0 %v1276, 64
  %v1396 = vpop.permute.xlu0 %1395
  %1397 = vrot.lane.b32.xlu0 %v1278, 64
  %v1398 = vpop.permute.xlu0 %1397
  %1399 = vrot.lane.b32.xlu0 %v1281, 64
  %v1400 = vpop.permute.xlu0 %1399
  %1401 = vrot.lane.b32.xlu0 %v1283, 64
  %v1402 = vpop.permute.xlu0 %1401
  %1403 = vrot.lane.b32.xlu0 %v1286, 64
  %v1404 = vpop.permute.xlu0 %1403
  %1405 = vrot.lane.b32.xlu0 %v1288, 64
  %v1406 = vpop.permute.xlu0 %1405
  %1407 = vrot.lane.b32.xlu0 %v1291, 64
  %v1408 = vpop.permute.xlu0 %1407
  %1409 = vrot.lane.b32.xlu0 %v1293, 64
  %v1410 = vpop.permute.xlu0 %1409
  %1411 = vrot.lane.b32.xlu0 %v1296, 64
  %v1412 = vpop.permute.xlu0 %1411
  %1413 = vrot.lane.b32.xlu0 %v1298, 64
  %v1414 = vpop.permute.xlu0 %1413
  %1415 = vrot.lane.b32.xlu0 %v1301, 64
  %v1416 = vpop.permute.xlu0 %1415
  %1417 = vrot.lane.b32.xlu0 %v1303, 64
  %v1418 = vpop.permute.xlu0 %1417
  %v1457 = vadd.f32 %v238, %v1344
  %v1458 = vadd.f32 %v240, %v1346
  %v1459 = vadd.f32 %v243, %v1348
  %v1460 = vadd.f32 %v245, %v1350
  %v1461 = vadd.f32 %v248, %v1352
  %v1462 = vadd.f32 %v250, %v1354
  %v1463 = vadd.f32 %v253, %v1356
  %v1464 = vadd.f32 %v255, %v1358
  %v1465 = vadd.f32 %v258, %v1360
  %v1466 = vadd.f32 %v260, %v1362
  %v1467 = vadd.f32 %v263, %v1364
  %v1468 = vadd.f32 %v265, %v1366
  %v1469 = vadd.f32 %v268, %v1368
  %v1470 = vadd.f32 %v270, %v1370
  %v1471 = vadd.f32 %v273, %v1372
  %v1472 = vadd.f32 %v275, %v1374
  %v1473 = vadd.f32 %v278, %v1376
  %v1474 = vadd.f32 %v280, %v1378
  %v1475 = vadd.f32 %v283, %v1380
  %v1476 = vadd.f32 %v285, %v1382
  %v1477 = vadd.f32 %v288, %v1384
  %v1478 = vadd.f32 %v290, %v1386
  %v1479 = vadd.f32 %v293, %v1388
  %v1480 = vadd.f32 %v295, %v1390
  %v1481 = vadd.f32 %v298, %v1392
  %v1482 = vadd.f32 %v300, %v1394
  %v1483 = vadd.f32 %v303, %v1396
  %v1484 = vadd.f32 %v305, %v1398
  %v1485 = vadd.f32 %v308, %v1400
  %v1486 = vadd.f32 %v310, %v1402
  %v1487 = vadd.f32 %v313, %v1404
  %v1488 = vadd.f32 %v315, %v1406
  %v1489 = vadd.f32 %v318, %v1408
  %v1490 = vadd.f32 %v320, %v1410
  %v1491 = vadd.f32 %v323, %v1412
  %v1492 = vadd.f32 %v325, %v1414
  %v1493 = vadd.f32 %v328, %v1416
  %v1494 = vadd.f32 %v330, %v1418
  %v1495 = vxor.u32 %v1457, 2147483648
  %v1496 = vxor.u32 %v1458, 2147483648
  %v1497 = vxor.u32 %v1459, 2147483648
  %v1498 = vxor.u32 %v1460, 2147483648
  %v1499 = vxor.u32 %v1461, 2147483648
  %v1500 = vxor.u32 %v1462, 2147483648
  %v1501 = vxor.u32 %v1463, 2147483648
  %v1502 = vxor.u32 %v1464, 2147483648
  %v1503 = vxor.u32 %v1465, 2147483648
  %v1504 = vxor.u32 %v1466, 2147483648
  %v1505 = vxor.u32 %v1467, 2147483648
  %v1506 = vxor.u32 %v1468, 2147483648
  %v1507 = vxor.u32 %v1469, 2147483648
  %v1508 = vxor.u32 %v1470, 2147483648
  %v1509 = vxor.u32 %v1471, 2147483648
  %v1510 = vxor.u32 %v1472, 2147483648
  %v1511 = vxor.u32 %v1473, 2147483648
  %v1512 = vxor.u32 %v1474, 2147483648
  %v1513 = vxor.u32 %v1475, 2147483648
  %v1514 = vxor.u32 %v1476, 2147483648
  %v1515 = vxor.u32 %v1477, 2147483648
  %v1516 = vxor.u32 %v1478, 2147483648
  %v1517 = vxor.u32 %v1479, 2147483648
  %v1518 = vxor.u32 %v1480, 2147483648
  %v1519 = vxor.u32 %v1481, 2147483648
  %v1520 = vxor.u32 %v1482, 2147483648
  %v1521 = vxor.u32 %v1483, 2147483648
  %v1522 = vxor.u32 %v1484, 2147483648
  %v1523 = vxor.u32 %v1485, 2147483648
  %v1524 = vxor.u32 %v1486, 2147483648
  %v1525 = vxor.u32 %v1487, 2147483648
  %v1526 = vxor.u32 %v1488, 2147483648
  %v1527 = vxor.u32 %v1489, 2147483648
  %v1528 = vxor.u32 %v1490, 2147483648
  %v1529 = vxor.u32 %v1491, 2147483648
  %v1530 = vxor.u32 %v1492, 2147483648
  %v1531 = vxor.u32 %v1493, 2147483648
  %v1532 = vxor.u32 %v1494, 2147483648
  %v1533 = vmul.f32 %v1495, 1.442695
  %v1534 = vpow.pop %v1533
  %v1535 = vmul.f32 %v1496, 1.442695
  %v1536 = vpow.pop %v1535
  %v1537 = vmul.f32 %v1497, 1.442695
  %v1538 = vpow.pop %v1537
  %v1539 = vmul.f32 %v1498, 1.442695
  %v1540 = vpow.pop %v1539
  %v1541 = vmul.f32 %v1499, 1.442695
  %v1542 = vpow.pop %v1541
  %v1543 = vmul.f32 %v1500, 1.442695
  %v1544 = vpow.pop %v1543
  %v1545 = vmul.f32 %v1501, 1.442695
  %v1546 = vpow.pop %v1545
  %v1547 = vmul.f32 %v1502, 1.442695
  %v1548 = vpow.pop %v1547
  %v1549 = vmul.f32 %v1503, 1.442695
  %v1550 = vpow.pop %v1549
  %v1551 = vmul.f32 %v1504, 1.442695
  %v1552 = vpow.pop %v1551
  %v1553 = vmul.f32 %v1505, 1.442695
  %v1554 = vpow.pop %v1553
  %v1555 = vmul.f32 %v1506, 1.442695
  %v1556 = vpow.pop %v1555
  %v1557 = vmul.f32 %v1507, 1.442695
  %v1558 = vpow.pop %v1557
  %v1559 = vmul.f32 %v1508, 1.442695
  %v1560 = vpow.pop %v1559
  %v1561 = vmul.f32 %v1509, 1.442695
  %v1562 = vpow.pop %v1561
  %v1563 = vmul.f32 %v1510, 1.442695
  %v1564 = vpow.pop %v1563
  %v1565 = vmul.f32 %v1511, 1.442695
  %v1566 = vpow.pop %v1565
  %v1567 = vmul.f32 %v1512, 1.442695
  %v1568 = vpow.pop %v1567
  %v1569 = vmul.f32 %v1513, 1.442695
  %v1570 = vpow.pop %v1569
  %v1571 = vmul.f32 %v1514, 1.442695
  %v1572 = vpow.pop %v1571
  %v1573 = vmul.f32 %v1515, 1.442695
  %v1574 = vpow.pop %v1573
  %v1575 = vmul.f32 %v1516, 1.442695
  %v1576 = vpow.pop %v1575
  %v1577 = vmul.f32 %v1517, 1.442695
  %v1578 = vpow.pop %v1577
  %v1579 = vmul.f32 %v1518, 1.442695
  %v1580 = vpow.pop %v1579
  %v1581 = vmul.f32 %v1519, 1.442695
  %v1582 = vpow.pop %v1581
  %v1583 = vmul.f32 %v1520, 1.442695
  %v1584 = vpow.pop %v1583
  %v1585 = vmul.f32 %v1521, 1.442695
  %v1586 = vpow.pop %v1585
  %v1587 = vmul.f32 %v1522, 1.442695
  %v1588 = vpow.pop %v1587
  %v1589 = vmul.f32 %v1523, 1.442695
  %v1590 = vpow.pop %v1589
  %v1591 = vmul.f32 %v1524, 1.442695
  %v1592 = vpow.pop %v1591
  %v1593 = vmul.f32 %v1525, 1.442695
  %v1594 = vpow.pop %v1593
  %v1595 = vmul.f32 %v1526, 1.442695
  %v1596 = vpow.pop %v1595
  %v1597 = vmul.f32 %v1527, 1.442695
  %v1598 = vpow.pop %v1597
  %v1599 = vmul.f32 %v1528, 1.442695
  %v1600 = vpow.pop %v1599
  %v1601 = vmul.f32 %v1529, 1.442695
  %v1602 = vpow.pop %v1601
  %v1603 = vmul.f32 %v1530, 1.442695
  %v1604 = vpow.pop %v1603
  %v1605 = vmul.f32 %v1531, 1.442695
  %v1606 = vpow.pop %v1605
  %v1607 = vmul.f32 %v1532, 1.442695
  %v1608 = vpow.pop %v1607
  %v1609 = vadd.f32 %v1534, 1.0
  %v1610 = vadd.f32 %v1536, 1.0
  %v1611 = vadd.f32 %v1538, 1.0
  %v1612 = vadd.f32 %v1540, 1.0
  %v1613 = vadd.f32 %v1542, 1.0
  %v1614 = vadd.f32 %v1544, 1.0
  %v1615 = vadd.f32 %v1546, 1.0
  %v1616 = vadd.f32 %v1548, 1.0
  %v1617 = vadd.f32 %v1550, 1.0
  %v1618 = vadd.f32 %v1552, 1.0
  %v1619 = vadd.f32 %v1554, 1.0
  %v1620 = vadd.f32 %v1556, 1.0
  %v1621 = vadd.f32 %v1558, 1.0
  %v1622 = vadd.f32 %v1560, 1.0
  %v1623 = vadd.f32 %v1562, 1.0
  %v1624 = vadd.f32 %v1564, 1.0
  %v1625 = vadd.f32 %v1566, 1.0
  %v1626 = vadd.f32 %v1568, 1.0
  %v1627 = vadd.f32 %v1570, 1.0
  %v1628 = vadd.f32 %v1572, 1.0
  %v1629 = vadd.f32 %v1574, 1.0
  %v1630 = vadd.f32 %v1576, 1.0
  %v1631 = vadd.f32 %v1578, 1.0
  %v1632 = vadd.f32 %v1580, 1.0
  %v1633 = vadd.f32 %v1582, 1.0
  %v1634 = vadd.f32 %v1584, 1.0
  %v1635 = vadd.f32 %v1586, 1.0
  %v1636 = vadd.f32 %v1588, 1.0
  %v1637 = vadd.f32 %v1590, 1.0
  %v1638 = vadd.f32 %v1592, 1.0
  %v1639 = vadd.f32 %v1594, 1.0
  %v1640 = vadd.f32 %v1596, 1.0
  %v1641 = vadd.f32 %v1598, 1.0
  %v1642 = vadd.f32 %v1600, 1.0
  %v1643 = vadd.f32 %v1602, 1.0
  %v1644 = vadd.f32 %v1604, 1.0
  %v1645 = vadd.f32 %v1606, 1.0
  %v1646 = vadd.f32 %v1608, 1.0
  %v1647 = vrcp.pop %v1609
  %v1648 = vmul.f32 %v1609, %v1647
  %v1649 = vsub.f32 1.0, %v1648
  %v1650 = vmul.f32 %v1647, %v1649
  %v1651 = vadd.f32 %v1647, %v1650
  %vm1652 = vweird.f32 %v1609
  %vm1653 = vweird.f32 %v1647
  %vm1654 = vmor %vm1652, %vm1653
  %v1655 = vsel %vm1654, %v1647, %v1651
  %v1656 = vand.u32 2147483647, %v1609
  %vm1657 = vcmp.eq.f32.partialorder %v1656, 8.507059e+37
  %v1658 = vand.u32 %v1609, 2147483648
  %v1659 = vor.u32 1.1754944e-38, %v1658
  %v1660 = vsel %vm1657, %v1659, %v1655
  %v1661 = vmul.f32 1.0, %v1660
  %v1662 = vrcp.pop %v1610
  %v1663 = vmul.f32 %v1610, %v1662
  %v1664 = vsub.f32 1.0, %v1663
  %v1665 = vmul.f32 %v1662, %v1664
  %v1666 = vadd.f32 %v1662, %v1665
  %vm1667 = vweird.f32 %v1610
  %vm1668 = vweird.f32 %v1662
  %vm1669 = vmor %vm1667, %vm1668
  %v1670 = vsel %vm1669, %v1662, %v1666
  %v1671 = vand.u32 2147483647, %v1610
  %vm1672 = vcmp.eq.f32.partialorder %v1671, 8.507059e+37
  %v1673 = vand.u32 %v1610, 2147483648
  %v1674 = vor.u32 1.1754944e-38, %v1673
  %v1675 = vsel %vm1672, %v1674, %v1670
  %v1676 = vmul.f32 1.0, %v1675
  %v1677 = vrcp.pop %v1611
  %v1678 = vmul.f32 %v1611, %v1677
  %v1679 = vsub.f32 1.0, %v1678
  %v1680 = vmul.f32 %v1677, %v1679
  %v1681 = vadd.f32 %v1677, %v1680
  %vm1682 = vweird.f32 %v1611
  %vm1683 = vweird.f32 %v1677
  %vm1684 = vmor %vm1682, %vm1683
  %v1685 = vsel %vm1684, %v1677, %v1681
  %v1686 = vand.u32 2147483647, %v1611
  %vm1687 = vcmp.eq.f32.partialorder %v1686, 8.507059e+37
  %v1688 = vand.u32 %v1611, 2147483648
  %v1689 = vor.u32 1.1754944e-38, %v1688
  %v1690 = vsel %vm1687, %v1689, %v1685
  %v1691 = vmul.f32 1.0, %v1690
  %v1692 = vrcp.pop %v1612
  %v1693 = vmul.f32 %v1612, %v1692
  %v1694 = vsub.f32 1.0, %v1693
  %v1695 = vmul.f32 %v1692, %v1694
  %v1696 = vadd.f32 %v1692, %v1695
  %vm1697 = vweird.f32 %v1612
  %vm1698 = vweird.f32 %v1692
  %vm1699 = vmor %vm1697, %vm1698
  %v1700 = vsel %vm1699, %v1692, %v1696
  %v1701 = vand.u32 2147483647, %v1612
  %vm1702 = vcmp.eq.f32.partialorder %v1701, 8.507059e+37
  %v1703 = vand.u32 %v1612, 2147483648
  %v1704 = vor.u32 1.1754944e-38, %v1703
  %v1705 = vsel %vm1702, %v1704, %v1700
  %v1706 = vmul.f32 1.0, %v1705
  %v1707 = vrcp.pop %v1613
  %v1708 = vmul.f32 %v1613, %v1707
  %v1709 = vsub.f32 1.0, %v1708
  %v1710 = vmul.f32 %v1707, %v1709
  %v1711 = vadd.f32 %v1707, %v1710
  %vm1712 = vweird.f32 %v1613
  %vm1713 = vweird.f32 %v1707
  %vm1714 = vmor %vm1712, %vm1713
  %v1715 = vsel %vm1714, %v1707, %v1711
  %v1716 = vand.u32 2147483647, %v1613
  %vm1717 = vcmp.eq.f32.partialorder %v1716, 8.507059e+37
  %v1718 = vand.u32 %v1613, 2147483648
  %v1719 = vor.u32 1.1754944e-38, %v1718
  %v1720 = vsel %vm1717, %v1719, %v1715
  %v1721 = vmul.f32 1.0, %v1720
  %v1722 = vrcp.pop %v1614
  %v1723 = vmul.f32 %v1614, %v1722
  %v1724 = vsub.f32 1.0, %v1723
  %v1725 = vmul.f32 %v1722, %v1724
  %v1726 = vadd.f32 %v1722, %v1725
  %vm1727 = vweird.f32 %v1614
  %vm1728 = vweird.f32 %v1722
  %vm1729 = vmor %vm1727, %vm1728
  %v1730 = vsel %vm1729, %v1722, %v1726
  %v1731 = vand.u32 2147483647, %v1614
  %vm1732 = vcmp.eq.f32.partialorder %v1731, 8.507059e+37
  %v1733 = vand.u32 %v1614, 2147483648
  %v1734 = vor.u32 1.1754944e-38, %v1733
  %v1735 = vsel %vm1732, %v1734, %v1730
  %v1736 = vmul.f32 1.0, %v1735
  %v1737 = vrcp.pop %v1615
  %v1738 = vmul.f32 %v1615, %v1737
  %v1739 = vsub.f32 1.0, %v1738
  %v1740 = vmul.f32 %v1737, %v1739
  %v1741 = vadd.f32 %v1737, %v1740
  %vm1742 = vweird.f32 %v1615
  %vm1743 = vweird.f32 %v1737
  %vm1744 = vmor %vm1742, %vm1743
  %v1745 = vsel %vm1744, %v1737, %v1741
  %v1746 = vand.u32 2147483647, %v1615
  %vm1747 = vcmp.eq.f32.partialorder %v1746, 8.507059e+37
  %v1748 = vand.u32 %v1615, 2147483648
  %v1749 = vor.u32 1.1754944e-38, %v1748
  %v1750 = vsel %vm1747, %v1749, %v1745
  %v1751 = vmul.f32 1.0, %v1750
  %v1752 = vrcp.pop %v1616
  %v1753 = vmul.f32 %v1616, %v1752
  %v1754 = vsub.f32 1.0, %v1753
  %v1755 = vmul.f32 %v1752, %v1754
  %v1756 = vadd.f32 %v1752, %v1755
  %vm1757 = vweird.f32 %v1616
  %vm1758 = vweird.f32 %v1752
  %vm1759 = vmor %vm1757, %vm1758
  %v1760 = vsel %vm1759, %v1752, %v1756
  %v1761 = vand.u32 2147483647, %v1616
  %vm1762 = vcmp.eq.f32.partialorder %v1761, 8.507059e+37
  %v1763 = vand.u32 %v1616, 2147483648
  %v1764 = vor.u32 1.1754944e-38, %v1763
  %v1765 = vsel %vm1762, %v1764, %v1760
  %v1766 = vmul.f32 1.0, %v1765
  %v1767 = vrcp.pop %v1617
  %v1768 = vmul.f32 %v1617, %v1767
  %v1769 = vsub.f32 1.0, %v1768
  %v1770 = vmul.f32 %v1767, %v1769
  %v1771 = vadd.f32 %v1767, %v1770
  %vm1772 = vweird.f32 %v1617
  %vm1773 = vweird.f32 %v1767
  %vm1774 = vmor %vm1772, %vm1773
  %v1775 = vsel %vm1774, %v1767, %v1771
  %v1776 = vand.u32 2147483647, %v1617
  %vm1777 = vcmp.eq.f32.partialorder %v1776, 8.507059e+37
  %v1778 = vand.u32 %v1617, 2147483648
  %v1779 = vor.u32 1.1754944e-38, %v1778
  %v1780 = vsel %vm1777, %v1779, %v1775
  %v1781 = vmul.f32 1.0, %v1780
  %v1782 = vrcp.pop %v1618
  %v1783 = vmul.f32 %v1618, %v1782
  %v1784 = vsub.f32 1.0, %v1783
  %v1785 = vmul.f32 %v1782, %v1784
  %v1786 = vadd.f32 %v1782, %v1785
  %vm1787 = vweird.f32 %v1618
  %vm1788 = vweird.f32 %v1782
  %vm1789 = vmor %vm1787, %vm1788
  %v1790 = vsel %vm1789, %v1782, %v1786
  %v1791 = vand.u32 2147483647, %v1618
  %vm1792 = vcmp.eq.f32.partialorder %v1791, 8.507059e+37
  %v1793 = vand.u32 %v1618, 2147483648
  %v1794 = vor.u32 1.1754944e-38, %v1793
  %v1795 = vsel %vm1792, %v1794, %v1790
  %v1796 = vmul.f32 1.0, %v1795
  %v1797 = vrcp.pop %v1619
  %v1798 = vmul.f32 %v1619, %v1797
  %v1799 = vsub.f32 1.0, %v1798
  %v1800 = vmul.f32 %v1797, %v1799
  %v1801 = vadd.f32 %v1797, %v1800
  %vm1802 = vweird.f32 %v1619
  %vm1803 = vweird.f32 %v1797
  %vm1804 = vmor %vm1802, %vm1803
  %v1805 = vsel %vm1804, %v1797, %v1801
  %v1806 = vand.u32 2147483647, %v1619
  %vm1807 = vcmp.eq.f32.partialorder %v1806, 8.507059e+37
  %v1808 = vand.u32 %v1619, 2147483648
  %v1809 = vor.u32 1.1754944e-38, %v1808
  %v1810 = vsel %vm1807, %v1809, %v1805
  %v1811 = vmul.f32 1.0, %v1810
  %v1812 = vrcp.pop %v1620
  %v1813 = vmul.f32 %v1620, %v1812
  %v1814 = vsub.f32 1.0, %v1813
  %v1815 = vmul.f32 %v1812, %v1814
  %v1816 = vadd.f32 %v1812, %v1815
  %vm1817 = vweird.f32 %v1620
  %vm1818 = vweird.f32 %v1812
  %vm1819 = vmor %vm1817, %vm1818
  %v1820 = vsel %vm1819, %v1812, %v1816
  %v1821 = vand.u32 2147483647, %v1620
  %vm1822 = vcmp.eq.f32.partialorder %v1821, 8.507059e+37
  %v1823 = vand.u32 %v1620, 2147483648
  %v1824 = vor.u32 1.1754944e-38, %v1823
  %v1825 = vsel %vm1822, %v1824, %v1820
  %v1826 = vmul.f32 1.0, %v1825
  %v1827 = vrcp.pop %v1621
  %v1828 = vmul.f32 %v1621, %v1827
  %v1829 = vsub.f32 1.0, %v1828
  %v1830 = vmul.f32 %v1827, %v1829
  %v1831 = vadd.f32 %v1827, %v1830
  %vm1832 = vweird.f32 %v1621
  %vm1833 = vweird.f32 %v1827
  %vm1834 = vmor %vm1832, %vm1833
  %v1835 = vsel %vm1834, %v1827, %v1831
  %v1836 = vand.u32 2147483647, %v1621
  %vm1837 = vcmp.eq.f32.partialorder %v1836, 8.507059e+37
  %v1838 = vand.u32 %v1621, 2147483648
  %v1839 = vor.u32 1.1754944e-38, %v1838
  %v1840 = vsel %vm1837, %v1839, %v1835
  %v1841 = vmul.f32 1.0, %v1840
  %v1842 = vrcp.pop %v1622
  %v1843 = vmul.f32 %v1622, %v1842
  %v1844 = vsub.f32 1.0, %v1843
  %v1845 = vmul.f32 %v1842, %v1844
  %v1846 = vadd.f32 %v1842, %v1845
  %vm1847 = vweird.f32 %v1622
  %vm1848 = vweird.f32 %v1842
  %vm1849 = vmor %vm1847, %vm1848
  %v1850 = vsel %vm1849, %v1842, %v1846
  %v1851 = vand.u32 2147483647, %v1622
  %vm1852 = vcmp.eq.f32.partialorder %v1851, 8.507059e+37
  %v1853 = vand.u32 %v1622, 2147483648
  %v1854 = vor.u32 1.1754944e-38, %v1853
  %v1855 = vsel %vm1852, %v1854, %v1850
  %v1856 = vmul.f32 1.0, %v1855
  %v1857 = vrcp.pop %v1623
  %v1858 = vmul.f32 %v1623, %v1857
  %v1859 = vsub.f32 1.0, %v1858
  %v1860 = vmul.f32 %v1857, %v1859
  %v1861 = vadd.f32 %v1857, %v1860
  %vm1862 = vweird.f32 %v1623
  %vm1863 = vweird.f32 %v1857
  %vm1864 = vmor %vm1862, %vm1863
  %v1865 = vsel %vm1864, %v1857, %v1861
  %v1866 = vand.u32 2147483647, %v1623
  %vm1867 = vcmp.eq.f32.partialorder %v1866, 8.507059e+37
  %v1868 = vand.u32 %v1623, 2147483648
  %v1869 = vor.u32 1.1754944e-38, %v1868
  %v1870 = vsel %vm1867, %v1869, %v1865
  %v1871 = vmul.f32 1.0, %v1870
  %v1872 = vrcp.pop %v1624
  %v1873 = vmul.f32 %v1624, %v1872
  %v1874 = vsub.f32 1.0, %v1873
  %v1875 = vmul.f32 %v1872, %v1874
  %v1876 = vadd.f32 %v1872, %v1875
  %vm1877 = vweird.f32 %v1624
  %vm1878 = vweird.f32 %v1872
  %vm1879 = vmor %vm1877, %vm1878
  %v1880 = vsel %vm1879, %v1872, %v1876
  %v1881 = vand.u32 2147483647, %v1624
  %vm1882 = vcmp.eq.f32.partialorder %v1881, 8.507059e+37
  %v1883 = vand.u32 %v1624, 2147483648
  %v1884 = vor.u32 1.1754944e-38, %v1883
  %v1885 = vsel %vm1882, %v1884, %v1880
  %v1886 = vmul.f32 1.0, %v1885
  %v1887 = vrcp.pop %v1625
  %v1888 = vmul.f32 %v1625, %v1887
  %v1889 = vsub.f32 1.0, %v1888
  %v1890 = vmul.f32 %v1887, %v1889
  %v1891 = vadd.f32 %v1887, %v1890
  %vm1892 = vweird.f32 %v1625
  %vm1893 = vweird.f32 %v1887
  %vm1894 = vmor %vm1892, %vm1893
  %v1895 = vsel %vm1894, %v1887, %v1891
  %v1896 = vand.u32 2147483647, %v1625
  %vm1897 = vcmp.eq.f32.partialorder %v1896, 8.507059e+37
  %v1898 = vand.u32 %v1625, 2147483648
  %v1899 = vor.u32 1.1754944e-38, %v1898
  %v1900 = vsel %vm1897, %v1899, %v1895
  %v1901 = vmul.f32 1.0, %v1900
  %v1902 = vrcp.pop %v1626
  %v1903 = vmul.f32 %v1626, %v1902
  %v1904 = vsub.f32 1.0, %v1903
  %v1905 = vmul.f32 %v1902, %v1904
  %v1906 = vadd.f32 %v1902, %v1905
  %vm1907 = vweird.f32 %v1626
  %vm1908 = vweird.f32 %v1902
  %vm1909 = vmor %vm1907, %vm1908
  %v1910 = vsel %vm1909, %v1902, %v1906
  %v1911 = vand.u32 2147483647, %v1626
  %vm1912 = vcmp.eq.f32.partialorder %v1911, 8.507059e+37
  %v1913 = vand.u32 %v1626, 2147483648
  %v1914 = vor.u32 1.1754944e-38, %v1913
  %v1915 = vsel %vm1912, %v1914, %v1910
  %v1916 = vmul.f32 1.0, %v1915
  %v1917 = vrcp.pop %v1627
  %v1918 = vmul.f32 %v1627, %v1917
  %v1919 = vsub.f32 1.0, %v1918
  %v1920 = vmul.f32 %v1917, %v1919
  %v1921 = vadd.f32 %v1917, %v1920
  %vm1922 = vweird.f32 %v1627
  %vm1923 = vweird.f32 %v1917
  %vm1924 = vmor %vm1922, %vm1923
  %v1925 = vsel %vm1924, %v1917, %v1921
  %v1926 = vand.u32 2147483647, %v1627
  %vm1927 = vcmp.eq.f32.partialorder %v1926, 8.507059e+37
  %v1928 = vand.u32 %v1627, 2147483648
  %v1929 = vor.u32 1.1754944e-38, %v1928
  %v1930 = vsel %vm1927, %v1929, %v1925
  %v1931 = vmul.f32 1.0, %v1930
  %v1932 = vrcp.pop %v1628
  %v1933 = vmul.f32 %v1628, %v1932
  %v1934 = vsub.f32 1.0, %v1933
  %v1935 = vmul.f32 %v1932, %v1934
  %v1936 = vadd.f32 %v1932, %v1935
  %vm1937 = vweird.f32 %v1628
  %vm1938 = vweird.f32 %v1932
  %vm1939 = vmor %vm1937, %vm1938
  %v1940 = vsel %vm1939, %v1932, %v1936
  %v1941 = vand.u32 2147483647, %v1628
  %vm1942 = vcmp.eq.f32.partialorder %v1941, 8.507059e+37
  %v1943 = vand.u32 %v1628, 2147483648
  %v1944 = vor.u32 1.1754944e-38, %v1943
  %v1945 = vsel %vm1942, %v1944, %v1940
  %v1946 = vmul.f32 1.0, %v1945
  %v1947 = vrcp.pop %v1629
  %v1948 = vmul.f32 %v1629, %v1947
  %v1949 = vsub.f32 1.0, %v1948
  %v1950 = vmul.f32 %v1947, %v1949
  %v1951 = vadd.f32 %v1947, %v1950
  %vm1952 = vweird.f32 %v1629
  %vm1953 = vweird.f32 %v1947
  %vm1954 = vmor %vm1952, %vm1953
  %v1955 = vsel %vm1954, %v1947, %v1951
  %v1956 = vand.u32 2147483647, %v1629
  %vm1957 = vcmp.eq.f32.partialorder %v1956, 8.507059e+37
  %v1958 = vand.u32 %v1629, 2147483648
  %v1959 = vor.u32 1.1754944e-38, %v1958
  %v1960 = vsel %vm1957, %v1959, %v1955
  %v1961 = vmul.f32 1.0, %v1960
  %v1962 = vrcp.pop %v1630
  %v1963 = vmul.f32 %v1630, %v1962
  %v1964 = vsub.f32 1.0, %v1963
  %v1965 = vmul.f32 %v1962, %v1964
  %v1966 = vadd.f32 %v1962, %v1965
  %vm1967 = vweird.f32 %v1630
  %vm1968 = vweird.f32 %v1962
  %vm1969 = vmor %vm1967, %vm1968
  %v1970 = vsel %vm1969, %v1962, %v1966
  %v1971 = vand.u32 2147483647, %v1630
  %vm1972 = vcmp.eq.f32.partialorder %v1971, 8.507059e+37
  %v1973 = vand.u32 %v1630, 2147483648
  %v1974 = vor.u32 1.1754944e-38, %v1973
  %v1975 = vsel %vm1972, %v1974, %v1970
  %v1976 = vmul.f32 1.0, %v1975
  %v1977 = vrcp.pop %v1631
  %v1978 = vmul.f32 %v1631, %v1977
  %v1979 = vsub.f32 1.0, %v1978
  %v1980 = vmul.f32 %v1977, %v1979
  %v1981 = vadd.f32 %v1977, %v1980
  %vm1982 = vweird.f32 %v1631
  %vm1983 = vweird.f32 %v1977
  %vm1984 = vmor %vm1982, %vm1983
  %v1985 = vsel %vm1984, %v1977, %v1981
  %v1986 = vand.u32 2147483647, %v1631
  %vm1987 = vcmp.eq.f32.partialorder %v1986, 8.507059e+37
  %v1988 = vand.u32 %v1631, 2147483648
  %v1989 = vor.u32 1.1754944e-38, %v1988
  %v1990 = vsel %vm1987, %v1989, %v1985
  %v1991 = vmul.f32 1.0, %v1990
  %v1992 = vrcp.pop %v1632
  %v1993 = vmul.f32 %v1632, %v1992
  %v1994 = vsub.f32 1.0, %v1993
  %v1995 = vmul.f32 %v1992, %v1994
  %v1996 = vadd.f32 %v1992, %v1995
  %vm1997 = vweird.f32 %v1632
  %vm1998 = vweird.f32 %v1992
  %vm1999 = vmor %vm1997, %vm1998
  %v2000 = vsel %vm1999, %v1992, %v1996
  %v2001 = vand.u32 2147483647, %v1632
  %vm2002 = vcmp.eq.f32.partialorder %v2001, 8.507059e+37
  %v2003 = vand.u32 %v1632, 2147483648
  %v2004 = vor.u32 1.1754944e-38, %v2003
  %v2005 = vsel %vm2002, %v2004, %v2000
  %v2006 = vmul.f32 1.0, %v2005
  %v2007 = vrcp.pop %v1633
  %v2008 = vmul.f32 %v1633, %v2007
  %v2009 = vsub.f32 1.0, %v2008
  %v2010 = vmul.f32 %v2007, %v2009
  %v2011 = vadd.f32 %v2007, %v2010
  %vm2012 = vweird.f32 %v1633
  %vm2013 = vweird.f32 %v2007
  %vm2014 = vmor %vm2012, %vm2013
  %v2015 = vsel %vm2014, %v2007, %v2011
  %v2016 = vand.u32 2147483647, %v1633
  %vm2017 = vcmp.eq.f32.partialorder %v2016, 8.507059e+37
  %v2018 = vand.u32 %v1633, 2147483648
  %v2019 = vor.u32 1.1754944e-38, %v2018
  %v2020 = vsel %vm2017, %v2019, %v2015
  %v2021 = vmul.f32 1.0, %v2020
  %v2022 = vrcp.pop %v1634
  %v2023 = vmul.f32 %v1634, %v2022
  %v2024 = vsub.f32 1.0, %v2023
  %v2025 = vmul.f32 %v2022, %v2024
  %v2026 = vadd.f32 %v2022, %v2025
  %vm2027 = vweird.f32 %v1634
  %vm2028 = vweird.f32 %v2022
  %vm2029 = vmor %vm2027, %vm2028
  %v2030 = vsel %vm2029, %v2022, %v2026
  %v2031 = vand.u32 2147483647, %v1634
  %vm2032 = vcmp.eq.f32.partialorder %v2031, 8.507059e+37
  %v2033 = vand.u32 %v1634, 2147483648
  %v2034 = vor.u32 1.1754944e-38, %v2033
  %v2035 = vsel %vm2032, %v2034, %v2030
  %v2036 = vmul.f32 1.0, %v2035
  %v2037 = vrcp.pop %v1635
  %v2038 = vmul.f32 %v1635, %v2037
  %v2039 = vsub.f32 1.0, %v2038
  %v2040 = vmul.f32 %v2037, %v2039
  %v2041 = vadd.f32 %v2037, %v2040
  %vm2042 = vweird.f32 %v1635
  %vm2043 = vweird.f32 %v2037
  %vm2044 = vmor %vm2042, %vm2043
  %v2045 = vsel %vm2044, %v2037, %v2041
  %v2046 = vand.u32 2147483647, %v1635
  %vm2047 = vcmp.eq.f32.partialorder %v2046, 8.507059e+37
  %v2048 = vand.u32 %v1635, 2147483648
  %v2049 = vor.u32 1.1754944e-38, %v2048
  %v2050 = vsel %vm2047, %v2049, %v2045
  %v2051 = vmul.f32 1.0, %v2050
  %v2052 = vrcp.pop %v1636
  %v2053 = vmul.f32 %v1636, %v2052
  %v2054 = vsub.f32 1.0, %v2053
  %v2055 = vmul.f32 %v2052, %v2054
  %v2056 = vadd.f32 %v2052, %v2055
  %vm2057 = vweird.f32 %v1636
  %vm2058 = vweird.f32 %v2052
  %vm2059 = vmor %vm2057, %vm2058
  %v2060 = vsel %vm2059, %v2052, %v2056
  %v2061 = vand.u32 2147483647, %v1636
  %vm2062 = vcmp.eq.f32.partialorder %v2061, 8.507059e+37
  %v2063 = vand.u32 %v1636, 2147483648
  %v2064 = vor.u32 1.1754944e-38, %v2063
  %v2065 = vsel %vm2062, %v2064, %v2060
  %v2066 = vmul.f32 1.0, %v2065
  %v2067 = vrcp.pop %v1637
  %v2068 = vmul.f32 %v1637, %v2067
  %v2069 = vsub.f32 1.0, %v2068
  %v2070 = vmul.f32 %v2067, %v2069
  %v2071 = vadd.f32 %v2067, %v2070
  %vm2072 = vweird.f32 %v1637
  %vm2073 = vweird.f32 %v2067
  %vm2074 = vmor %vm2072, %vm2073
  %v2075 = vsel %vm2074, %v2067, %v2071
  %v2076 = vand.u32 2147483647, %v1637
  %vm2077 = vcmp.eq.f32.partialorder %v2076, 8.507059e+37
  %v2078 = vand.u32 %v1637, 2147483648
  %v2079 = vor.u32 1.1754944e-38, %v2078
  %v2080 = vsel %vm2077, %v2079, %v2075
  %v2081 = vmul.f32 1.0, %v2080
  %v2082 = vrcp.pop %v1638
  %v2083 = vmul.f32 %v1638, %v2082
  %v2084 = vsub.f32 1.0, %v2083
  %v2085 = vmul.f32 %v2082, %v2084
  %v2086 = vadd.f32 %v2082, %v2085
  %vm2087 = vweird.f32 %v1638
  %vm2088 = vweird.f32 %v2082
  %vm2089 = vmor %vm2087, %vm2088
  %v2090 = vsel %vm2089, %v2082, %v2086
  %v2091 = vand.u32 2147483647, %v1638
  %vm2092 = vcmp.eq.f32.partialorder %v2091, 8.507059e+37
  %v2093 = vand.u32 %v1638, 2147483648
  %v2094 = vor.u32 1.1754944e-38, %v2093
  %v2095 = vsel %vm2092, %v2094, %v2090
  %v2096 = vmul.f32 1.0, %v2095
  %v2097 = vrcp.pop %v1639
  %v2098 = vmul.f32 %v1639, %v2097
  %v2099 = vsub.f32 1.0, %v2098
  %v2100 = vmul.f32 %v2097, %v2099
  %v2101 = vadd.f32 %v2097, %v2100
  %vm2102 = vweird.f32 %v1639
  %vm2103 = vweird.f32 %v2097
  %vm2104 = vmor %vm2102, %vm2103
  %v2105 = vsel %vm2104, %v2097, %v2101
  %v2106 = vand.u32 2147483647, %v1639
  %vm2107 = vcmp.eq.f32.partialorder %v2106, 8.507059e+37
  %v2108 = vand.u32 %v1639, 2147483648
  %v2109 = vor.u32 1.1754944e-38, %v2108
  %v2110 = vsel %vm2107, %v2109, %v2105
  %v2111 = vmul.f32 1.0, %v2110
  %v2112 = vrcp.pop %v1640
  %v2113 = vmul.f32 %v1640, %v2112
  %v2114 = vsub.f32 1.0, %v2113
  %v2115 = vmul.f32 %v2112, %v2114
  %v2116 = vadd.f32 %v2112, %v2115
  %vm2117 = vweird.f32 %v1640
  %vm2118 = vweird.f32 %v2112
  %vm2119 = vmor %vm2117, %vm2118
  %v2120 = vsel %vm2119, %v2112, %v2116
  %v2121 = vand.u32 2147483647, %v1640
  %vm2122 = vcmp.eq.f32.partialorder %v2121, 8.507059e+37
  %v2123 = vand.u32 %v1640, 2147483648
  %v2124 = vor.u32 1.1754944e-38, %v2123
  %v2125 = vsel %vm2122, %v2124, %v2120
  %v2126 = vmul.f32 1.0, %v2125
  %v2127 = vrcp.pop %v1641
  %v2128 = vmul.f32 %v1641, %v2127
  %v2129 = vsub.f32 1.0, %v2128
  %v2130 = vmul.f32 %v2127, %v2129
  %v2131 = vadd.f32 %v2127, %v2130
  %vm2132 = vweird.f32 %v1641
  %vm2133 = vweird.f32 %v2127
  %vm2134 = vmor %vm2132, %vm2133
  %v2135 = vsel %vm2134, %v2127, %v2131
  %v2136 = vand.u32 2147483647, %v1641
  %vm2137 = vcmp.eq.f32.partialorder %v2136, 8.507059e+37
  %v2138 = vand.u32 %v1641, 2147483648
  %v2139 = vor.u32 1.1754944e-38, %v2138
  %v2140 = vsel %vm2137, %v2139, %v2135
  %v2141 = vmul.f32 1.0, %v2140
  %v2142 = vrcp.pop %v1642
  %v2143 = vmul.f32 %v1642, %v2142
  %v2144 = vsub.f32 1.0, %v2143
  %v2145 = vmul.f32 %v2142, %v2144
  %v2146 = vadd.f32 %v2142, %v2145
  %vm2147 = vweird.f32 %v1642
  %vm2148 = vweird.f32 %v2142
  %vm2149 = vmor %vm2147, %vm2148
  %v2150 = vsel %vm2149, %v2142, %v2146
  %v2151 = vand.u32 2147483647, %v1642
  %vm2152 = vcmp.eq.f32.partialorder %v2151, 8.507059e+37
  %v2153 = vand.u32 %v1642, 2147483648
  %v2154 = vor.u32 1.1754944e-38, %v2153
  %v2155 = vsel %vm2152, %v2154, %v2150
  %v2156 = vmul.f32 1.0, %v2155
  %v2157 = vrcp.pop %v1643
  %v2158 = vmul.f32 %v1643, %v2157
  %v2159 = vsub.f32 1.0, %v2158
  %v2160 = vmul.f32 %v2157, %v2159
  %v2161 = vadd.f32 %v2157, %v2160
  %vm2162 = vweird.f32 %v1643
  %vm2163 = vweird.f32 %v2157
  %vm2164 = vmor %vm2162, %vm2163
  %v2165 = vsel %vm2164, %v2157, %v2161
  %v2166 = vand.u32 2147483647, %v1643
  %vm2167 = vcmp.eq.f32.partialorder %v2166, 8.507059e+37
  %v2168 = vand.u32 %v1643, 2147483648
  %v2169 = vor.u32 1.1754944e-38, %v2168
  %v2170 = vsel %vm2167, %v2169, %v2165
  %v2171 = vmul.f32 1.0, %v2170
  %v2172 = vrcp.pop %v1644
  %v2173 = vmul.f32 %v1644, %v2172
  %v2174 = vsub.f32 1.0, %v2173
  %v2175 = vmul.f32 %v2172, %v2174
  %v2176 = vadd.f32 %v2172, %v2175
  %vm2177 = vweird.f32 %v1644
  %vm2178 = vweird.f32 %v2172
  %vm2179 = vmor %vm2177, %vm2178
  %v2180 = vsel %vm2179, %v2172, %v2176
  %v2181 = vand.u32 2147483647, %v1644
  %vm2182 = vcmp.eq.f32.partialorder %v2181, 8.507059e+37
  %v2183 = vand.u32 %v1644, 2147483648
  %v2184 = vor.u32 1.1754944e-38, %v2183
  %v2185 = vsel %vm2182, %v2184, %v2180
  %v2186 = vmul.f32 1.0, %v2185
  %v2187 = vrcp.pop %v1645
  %v2188 = vmul.f32 %v1645, %v2187
  %v2189 = vsub.f32 1.0, %v2188
  %v2190 = vmul.f32 %v2187, %v2189
  %v2191 = vadd.f32 %v2187, %v2190
  %vm2192 = vweird.f32 %v1645
  %vm2193 = vweird.f32 %v2187
  %vm2194 = vmor %vm2192, %vm2193
  %v2195 = vsel %vm2194, %v2187, %v2191
  %v2196 = vand.u32 2147483647, %v1645
  %vm2197 = vcmp.eq.f32.partialorder %v2196, 8.507059e+37
  %v2198 = vand.u32 %v1645, 2147483648
  %v2199 = vor.u32 1.1754944e-38, %v2198
  %v2200 = vsel %vm2197, %v2199, %v2195
  %v2201 = vmul.f32 1.0, %v2200
  %v2202 = vrcp.pop %v1646
  %v2203 = vmul.f32 %v1646, %v2202
  %v2204 = vsub.f32 1.0, %v2203
  %v2205 = vmul.f32 %v2202, %v2204
  %v2206 = vadd.f32 %v2202, %v2205
  %vm2207 = vweird.f32 %v1646
  %vm2208 = vweird.f32 %v2202
  %vm2209 = vmor %vm2207, %vm2208
  %v2210 = vsel %vm2209, %v2202, %v2206
  %v2211 = vand.u32 2147483647, %v1646
  %vm2212 = vcmp.eq.f32.partialorder %v2211, 8.507059e+37
  %v2213 = vand.u32 %v1646, 2147483648
  %v2214 = vor.u32 1.1754944e-38, %v2213
  %v2215 = vsel %vm2212, %v2214, %v2210
  %v2216 = vmul.f32 1.0, %v2215
  %v2217 = vmul.f32 %v1457, %v1661
  %v2218 = vmul.f32 %v1458, %v1676
  %v2219 = vmul.f32 %v1459, %v1691
  %v2220 = vmul.f32 %v1460, %v1706
  %v2221 = vmul.f32 %v1461, %v1721
  %v2222 = vmul.f32 %v1462, %v1736
  %v2223 = vmul.f32 %v1463, %v1751
  %v2224 = vmul.f32 %v1464, %v1766
  %v2225 = vmul.f32 %v1465, %v1781
  %v2226 = vmul.f32 %v1466, %v1796
  %v2227 = vmul.f32 %v1467, %v1811
  %v2228 = vmul.f32 %v1468, %v1826
  %v2229 = vmul.f32 %v1469, %v1841
  %v2230 = vmul.f32 %v1470, %v1856
  %v2231 = vmul.f32 %v1471, %v1871
  %v2232 = vmul.f32 %v1472, %v1886
  %v2233 = vmul.f32 %v1473, %v1901
  %v2234 = vmul.f32 %v1474, %v1916
  %v2235 = vmul.f32 %v1475, %v1931
  %v2236 = vmul.f32 %v1476, %v1946
  %v2237 = vmul.f32 %v1477, %v1961
  %v2238 = vmul.f32 %v1478, %v1976
  %v2239 = vmul.f32 %v1479, %v1991
  %v2240 = vmul.f32 %v1480, %v2006
  %v2241 = vmul.f32 %v1481, %v2021
  %v2242 = vmul.f32 %v1482, %v2036
  %v2243 = vmul.f32 %v1483, %v2051
  %v2244 = vmul.f32 %v1484, %v2066
  %v2245 = vmul.f32 %v1485, %v2081
  %v2246 = vmul.f32 %v1486, %v2096
  %v2247 = vmul.f32 %v1487, %v2111
  %v2248 = vmul.f32 %v1488, %v2126
  %v2249 = vmul.f32 %v1489, %v2141
  %v2250 = vmul.f32 %v1490, %v2156
  %v2251 = vmul.f32 %v1491, %v2171
  %v2252 = vmul.f32 %v1492, %v2186
  %v2253 = vmul.f32 %v1493, %v2201
  %v2254 = vmul.f32 %v1494, %v2216
  %v2255 = vpack.c.bf16 %v2218, %v2217
  %v2256 = vpack.c.bf16 %v2220, %v2219
  %v2257 = vpack.c.bf16 %v2222, %v2221
  %v2258 = vpack.c.bf16 %v2224, %v2223
  %v2259 = vpack.c.bf16 %v2226, %v2225
  %v2260 = vpack.c.bf16 %v2228, %v2227
  %v2261 = vpack.c.bf16 %v2230, %v2229
  %v2262 = vpack.c.bf16 %v2232, %v2231
  %v2263 = vpack.c.bf16 %v2234, %v2233
  %v2264 = vpack.c.bf16 %v2236, %v2235
  %v2265 = vpack.c.bf16 %v2238, %v2237
  %v2266 = vpack.c.bf16 %v2240, %v2239
  %v2267 = vpack.c.bf16 %v2242, %v2241
  %v2268 = vpack.c.bf16 %v2244, %v2243
  %v2269 = vpack.c.bf16 %v2246, %v2245
  %v2270 = vpack.c.bf16 %v2248, %v2247
  %v2271 = vpack.c.bf16 %v2250, %v2249
  %v2272 = vpack.c.bf16 %v2252, %v2251
  %v2273 = vpack.c.bf16 %v2254, %v2253
  %v2274 = vld [vmem:[%s3] sm:$0xf]
  %v2275 = vld [vmem:[%s3 + $0x4] sm:$0xf]
  %v2276 = vld [vmem:[%s3 + $0x8] sm:$0xf]
  %v2277 = vld [vmem:[%s3 + $0xc] sm:$0xf]
  %v2278 = vld [vmem:[%s3 + $0x10] sm:$0xf]
  %v2279 = vld [vmem:[%s3 + $0x14] sm:$0xf]
  %v2280 = vld [vmem:[%s3 + $0x18] sm:$0xf]
  %v2281 = vld [vmem:[%s3 + $0x1c] sm:$0xf]
  %2301 = vrot.lane.b32.xlu0 %v2255, 64
  %v2302 = vpop.permute.xlu0 %2301
  %2303 = vrot.lane.b32.xlu0 %v2256, 64
  %v2304 = vpop.permute.xlu0 %2303
  %2305 = vrot.lane.b32.xlu0 %v2257, 64
  %v2306 = vpop.permute.xlu0 %2305
  %2307 = vrot.lane.b32.xlu0 %v2258, 64
  %v2308 = vpop.permute.xlu0 %2307
  %2309 = vrot.lane.b32.xlu0 %v2259, 64
  %v2310 = vpop.permute.xlu0 %2309
  %2311 = vrot.lane.b32.xlu0 %v2260, 64
  %v2312 = vpop.permute.xlu0 %2311
  %2313 = vrot.lane.b32.xlu0 %v2261, 64
  %v2314 = vpop.permute.xlu0 %2313
  %2315 = vrot.lane.b32.xlu0 %v2262, 64
  %v2316 = vpop.permute.xlu0 %2315
  %2317 = vrot.lane.b32.xlu0 %v2263, 64
  %v2318 = vpop.permute.xlu0 %2317
  %2319 = vrot.lane.b32.xlu0 %v2264, 64
  %v2320 = vpop.permute.xlu0 %2319
  %2321 = vrot.lane.b32.xlu0 %v2265, 64
  %v2322 = vpop.permute.xlu0 %2321
  %2323 = vrot.lane.b32.xlu0 %v2266, 64
  %v2324 = vpop.permute.xlu0 %2323
  %2325 = vrot.lane.b32.xlu0 %v2267, 64
  %v2326 = vpop.permute.xlu0 %2325
  %2327 = vrot.lane.b32.xlu0 %v2268, 64
  %v2328 = vpop.permute.xlu0 %2327
  %2329 = vrot.lane.b32.xlu0 %v2269, 64
  %v2330 = vpop.permute.xlu0 %2329
  %2331 = vrot.lane.b32.xlu0 %v2270, 64
  %v2332 = vpop.permute.xlu0 %2331
  %2333 = vrot.lane.b32.xlu0 %v2271, 64
  %v2334 = vpop.permute.xlu0 %2333
  %2335 = vrot.lane.b32.xlu0 %v2272, 64
  %v2336 = vpop.permute.xlu0 %2335
  %2337 = vrot.lane.b32.xlu0 %v2273, 64
  %v2338 = vpop.permute.xlu0 %2337
  %v2347 = vunpack.c.l.b16 %v2274
  %v2348 = vunpack.c.l.b16 %v2275
  %v2349 = vunpack.c.l.b16 %v2276
  %v2350 = vunpack.c.l.b16 %v2277
  %v2351 = vunpack.c.l.b16 %v2278
  %v2352 = vunpack.c.l.b16 %v2279
  %v2353 = vunpack.c.l.b16 %v2280
  %v2354 = vunpack.c.l.b16 %v2281
  %v2355 = vpack.c.b16 %v2348, %v2347
  %v2356 = vpack.c.b16 %v2350, %v2349
  %v2357 = vpack.c.b16 %v2352, %v2351
  %v2358 = vpack.c.b16 %v2354, %v2353
  %v2364 = vsel %vm1143, %v2302, 0
  %v2367 = vsel %vm1143, %v2304, 0
  %v2370 = vsel %vm1143, %v2306, 0
  %v2373 = vsel %vm1143, %v2308, 0
  %v2376 = vsel %vm1143, %v2310, 0
  %v2379 = vsel %vm1143, %v2312, 0
  %v2382 = vsel %vm1143, %v2314, 0
  %v2385 = vsel %vm1143, %v2316, 0
  %v2388 = vsel %vm1143, %v2318, 0
  %v2391 = vsel %vm1143, %v2320, 0
  %v2394 = vsel %vm1143, %v2322, 0
  %v2397 = vsel %vm1143, %v2324, 0
  %v2400 = vsel %vm1143, %v2326, 0
  %v2403 = vsel %vm1143, %v2328, 0
  %v2406 = vsel %vm1143, %v2330, 0
  %v2409 = vsel %vm1143, %v2332, 0
  %v2412 = vsel %vm1143, %v2334, 0
  %v2415 = vsel %vm1143, %v2336, 0
  %v2418 = vsel %vm1143, %v2338, 0
  %2420 = vmatpush.bf16.msra.mxu0 0
  %2421 = vmatpush.bf16.msra.mxu0 0
  %2422 = vmatpush.bf16.msra.mxu0 0
  %2423 = vmatpush.bf16.msra.mxu0 0
  %2424 = vmatpush.bf16.msra.mxu0 %v2358
  %2425 = vmatpush.bf16.msra.mxu0 %v2357
  %2426 = vmatpush.bf16.msra.mxu0 %v2356
  %2427 = vmatpush.bf16.msra.mxu0 %v2355
  %2428 = vmatmul.bf16.gmra.mxu0 %v2364
  %v2429 = vpop.f32.mrf.mxu0
  %v2430 = vadd.f32 0.0, %v2429
  %v2431 = vpop.f32.mrf.mxu0
  %v2432 = vadd.f32 0.0, %v2431
  %2433 = vmatmul.bf16.gmra.mxu0 %v2367
  %v2434 = vpop.f32.mrf.mxu0
  %v2435 = vadd.f32 0.0, %v2434
  %v2436 = vpop.f32.mrf.mxu0
  %v2437 = vadd.f32 0.0, %v2436
  %2438 = vmatmul.bf16.gmra.mxu0 %v2370
  %v2439 = vpop.f32.mrf.mxu0
  %v2440 = vadd.f32 0.0, %v2439
  %v2441 = vpop.f32.mrf.mxu0
  %v2442 = vadd.f32 0.0, %v2441
  %2443 = vmatmul.bf16.gmra.mxu0 %v2373
  %v2444 = vpop.f32.mrf.mxu0
  %v2445 = vadd.f32 0.0, %v2444
  %v2446 = vpop.f32.mrf.mxu0
  %v2447 = vadd.f32 0.0, %v2446
  %2448 = vmatmul.bf16.gmra.mxu0 %v2376
  %v2449 = vpop.f32.mrf.mxu0
  %v2450 = vadd.f32 0.0, %v2449
  %v2451 = vpop.f32.mrf.mxu0
  %v2452 = vadd.f32 0.0, %v2451
  %2453 = vmatmul.bf16.gmra.mxu0 %v2379
  %v2454 = vpop.f32.mrf.mxu0
  %v2455 = vadd.f32 0.0, %v2454
  %v2456 = vpop.f32.mrf.mxu0
  %v2457 = vadd.f32 0.0, %v2456
  %2458 = vmatmul.bf16.gmra.mxu0 %v2382
  %v2459 = vpop.f32.mrf.mxu0
  %v2460 = vadd.f32 0.0, %v2459
  %v2461 = vpop.f32.mrf.mxu0
  %v2462 = vadd.f32 0.0, %v2461
  %2463 = vmatmul.bf16.gmra.mxu0 %v2385
  %v2464 = vpop.f32.mrf.mxu0
  %v2465 = vadd.f32 0.0, %v2464
  %v2466 = vpop.f32.mrf.mxu0
  %v2467 = vadd.f32 0.0, %v2466
  %2468 = vmatmul.bf16.gmra.mxu0 %v2388
  %v2469 = vpop.f32.mrf.mxu0
  %v2470 = vadd.f32 0.0, %v2469
  %v2471 = vpop.f32.mrf.mxu0
  %v2472 = vadd.f32 0.0, %v2471
  %2473 = vmatmul.bf16.gmra.mxu0 %v2391
  %v2474 = vpop.f32.mrf.mxu0
  %v2475 = vadd.f32 0.0, %v2474
  %v2476 = vpop.f32.mrf.mxu0
  %v2477 = vadd.f32 0.0, %v2476
  %2478 = vmatmul.bf16.gmra.mxu0 %v2394
  %v2479 = vpop.f32.mrf.mxu0
  %v2480 = vadd.f32 0.0, %v2479
  %v2481 = vpop.f32.mrf.mxu0
  %v2482 = vadd.f32 0.0, %v2481
  %2483 = vmatmul.bf16.gmra.mxu0 %v2397
  %v2484 = vpop.f32.mrf.mxu0
  %v2485 = vadd.f32 0.0, %v2484
  %v2486 = vpop.f32.mrf.mxu0
  %v2487 = vadd.f32 0.0, %v2486
  %2488 = vmatmul.bf16.gmra.mxu0 %v2400
  %v2489 = vpop.f32.mrf.mxu0
  %v2490 = vadd.f32 0.0, %v2489
  %v2491 = vpop.f32.mrf.mxu0
  %v2492 = vadd.f32 0.0, %v2491
  %2493 = vmatmul.bf16.gmra.mxu0 %v2403
  %v2494 = vpop.f32.mrf.mxu0
  %v2495 = vadd.f32 0.0, %v2494
  %v2496 = vpop.f32.mrf.mxu0
  %v2497 = vadd.f32 0.0, %v2496
  %2498 = vmatmul.bf16.gmra.mxu0 %v2406
  %v2499 = vpop.f32.mrf.mxu0
  %v2500 = vadd.f32 0.0, %v2499
  %v2501 = vpop.f32.mrf.mxu0
  %v2502 = vadd.f32 0.0, %v2501
  %2503 = vmatmul.bf16.gmra.mxu0 %v2409
  %v2504 = vpop.f32.mrf.mxu0
  %v2505 = vadd.f32 0.0, %v2504
  %v2506 = vpop.f32.mrf.mxu0
  %v2507 = vadd.f32 0.0, %v2506
  %2508 = vmatmul.bf16.gmra.mxu0 %v2412
  %v2509 = vpop.f32.mrf.mxu0
  %v2510 = vadd.f32 0.0, %v2509
  %v2511 = vpop.f32.mrf.mxu0
  %v2512 = vadd.f32 0.0, %v2511
  %2513 = vmatmul.bf16.gmra.mxu0 %v2415
  %v2514 = vpop.f32.mrf.mxu0
  %v2515 = vadd.f32 0.0, %v2514
  %v2516 = vpop.f32.mrf.mxu0
  %v2517 = vadd.f32 0.0, %v2516
  %2518 = vmatmul.bf16.gmra.mxu0 %v2418
  %v2519 = vpop.f32.mrf.mxu0
  %v2520 = vadd.f32 0.0, %v2519
  %v2521 = vpop.f32.mrf.mxu0
  %v2522 = vadd.f32 0.0, %v2521
  %2523 = vdwg.mxu0
  %vm2524 = vcmp.gt.f32.partialorder %v2430, 0.0
  %vm2525 = vcmp.gt.f32.partialorder %v2432, 0.0
  %vm2526 = vcmp.gt.f32.partialorder %v2435, 0.0
  %vm2527 = vcmp.gt.f32.partialorder %v2437, 0.0
  %vm2528 = vcmp.gt.f32.partialorder %v2440, 0.0
  %vm2529 = vcmp.gt.f32.partialorder %v2442, 0.0
  %vm2530 = vcmp.gt.f32.partialorder %v2445, 0.0
  %vm2531 = vcmp.gt.f32.partialorder %v2447, 0.0
  %vm2532 = vcmp.gt.f32.partialorder %v2450, 0.0
  %vm2533 = vcmp.gt.f32.partialorder %v2452, 0.0
  %vm2534 = vcmp.gt.f32.partialorder %v2455, 0.0
  %vm2535 = vcmp.gt.f32.partialorder %v2457, 0.0
  %vm2536 = vcmp.gt.f32.partialorder %v2460, 0.0
  %vm2537 = vcmp.gt.f32.partialorder %v2462, 0.0
  %vm2538 = vcmp.gt.f32.partialorder %v2465, 0.0
  %vm2539 = vcmp.gt.f32.partialorder %v2467, 0.0
  %vm2540 = vcmp.gt.f32.partialorder %v2470, 0.0
  %vm2541 = vcmp.gt.f32.partialorder %v2472, 0.0
  %vm2542 = vcmp.gt.f32.partialorder %v2475, 0.0
  %vm2543 = vcmp.gt.f32.partialorder %v2477, 0.0
  %vm2544 = vcmp.gt.f32.partialorder %v2480, 0.0
  %vm2545 = vcmp.gt.f32.partialorder %v2482, 0.0
  %vm2546 = vcmp.gt.f32.partialorder %v2485, 0.0
  %vm2547 = vcmp.gt.f32.partialorder %v2487, 0.0
  %vm2548 = vcmp.gt.f32.partialorder %v2490, 0.0
  %vm2549 = vcmp.gt.f32.partialorder %v2492, 0.0
  %vm2550 = vcmp.gt.f32.partialorder %v2495, 0.0
  %vm2551 = vcmp.gt.f32.partialorder %v2497, 0.0
  %vm2552 = vcmp.gt.f32.partialorder %v2500, 0.0
  %vm2553 = vcmp.gt.f32.partialorder %v2502, 0.0
  %vm2554 = vcmp.gt.f32.partialorder %v2505, 0.0
  %vm2555 = vcmp.gt.f32.partialorder %v2507, 0.0
  %vm2556 = vcmp.gt.f32.partialorder %v2510, 0.0
  %vm2557 = vcmp.gt.f32.partialorder %v2512, 0.0
  %vm2558 = vcmp.gt.f32.partialorder %v2515, 0.0
  %vm2559 = vcmp.gt.f32.partialorder %v2517, 0.0
  %vm2560 = vcmp.gt.f32.partialorder %v2520, 0.0
  %vm2561 = vcmp.gt.f32.partialorder %v2522, 0.0
  %v2562 = vmin.f32 %v2430, 0.0
  %v2563 = vmin.f32 %v2432, 0.0
  %v2564 = vmin.f32 %v2435, 0.0
  %v2565 = vmin.f32 %v2437, 0.0
  %v2566 = vmin.f32 %v2440, 0.0
  %v2567 = vmin.f32 %v2442, 0.0
  %v2568 = vmin.f32 %v2445, 0.0
  %v2569 = vmin.f32 %v2447, 0.0
  %v2570 = vmin.f32 %v2450, 0.0
  %v2571 = vmin.f32 %v2452, 0.0
  %v2572 = vmin.f32 %v2455, 0.0
  %v2573 = vmin.f32 %v2457, 0.0
  %v2574 = vmin.f32 %v2460, 0.0
  %v2575 = vmin.f32 %v2462, 0.0
  %v2576 = vmin.f32 %v2465, 0.0
  %v2577 = vmin.f32 %v2467, 0.0
  %v2578 = vmin.f32 %v2470, 0.0
  %v2579 = vmin.f32 %v2472, 0.0
  %v2580 = vmin.f32 %v2475, 0.0
  %v2581 = vmin.f32 %v2477, 0.0
  %v2582 = vmin.f32 %v2480, 0.0
  %v2583 = vmin.f32 %v2482, 0.0
  %v2584 = vmin.f32 %v2485, 0.0
  %v2585 = vmin.f32 %v2487, 0.0
  %v2586 = vmin.f32 %v2490, 0.0
  %v2587 = vmin.f32 %v2492, 0.0
  %v2588 = vmin.f32 %v2495, 0.0
  %v2589 = vmin.f32 %v2497, 0.0
  %v2590 = vmin.f32 %v2500, 0.0
  %v2591 = vmin.f32 %v2502, 0.0
  %v2592 = vmin.f32 %v2505, 0.0
  %v2593 = vmin.f32 %v2507, 0.0
  %v2594 = vmin.f32 %v2510, 0.0
  %v2595 = vmin.f32 %v2512, 0.0
  %v2596 = vmin.f32 %v2515, 0.0
  %v2597 = vmin.f32 %v2517, 0.0
  %v2598 = vmin.f32 %v2520, 0.0
  %v2599 = vmin.f32 %v2522, 0.0
  %v2600 = vmul.f32 %v2562, 1.442695
  %v2601 = vpow.pop %v2600
  %v2602 = vmul.f32 %v2563, 1.442695
  %v2603 = vpow.pop %v2602
  %v2604 = vmul.f32 %v2564, 1.442695
  %v2605 = vpow.pop %v2604
  %v2606 = vmul.f32 %v2565, 1.442695
  %v2607 = vpow.pop %v2606
  %v2608 = vmul.f32 %v2566, 1.442695
  %v2609 = vpow.pop %v2608
  %v2610 = vmul.f32 %v2567, 1.442695
  %v2611 = vpow.pop %v2610
  %v2612 = vmul.f32 %v2568, 1.442695
  %v2613 = vpow.pop %v2612
  %v2614 = vmul.f32 %v2569, 1.442695
  %v2615 = vpow.pop %v2614
  %v2616 = vmul.f32 %v2570, 1.442695
  %v2617 = vpow.pop %v2616
  %v2618 = vmul.f32 %v2571, 1.442695
  %v2619 = vpow.pop %v2618
  %v2620 = vmul.f32 %v2572, 1.442695
  %v2621 = vpow.pop %v2620
  %v2622 = vmul.f32 %v2573, 1.442695
  %v2623 = vpow.pop %v2622
  %v2624 = vmul.f32 %v2574, 1.442695
  %v2625 = vpow.pop %v2624
  %v2626 = vmul.f32 %v2575, 1.442695
  %v2627 = vpow.pop %v2626
  %v2628 = vmul.f32 %v2576, 1.442695
  %v2629 = vpow.pop %v2628
  %v2630 = vmul.f32 %v2577, 1.442695
  %v2631 = vpow.pop %v2630
  %v2632 = vmul.f32 %v2578, 1.442695
  %v2633 = vpow.pop %v2632
  %v2634 = vmul.f32 %v2579, 1.442695
  %v2635 = vpow.pop %v2634
  %v2636 = vmul.f32 %v2580, 1.442695
  %v2637 = vpow.pop %v2636
  %v2638 = vmul.f32 %v2581, 1.442695
  %v2639 = vpow.pop %v2638
  %v2640 = vmul.f32 %v2582, 1.442695
  %v2641 = vpow.pop %v2640
  %v2642 = vmul.f32 %v2583, 1.442695
  %v2643 = vpow.pop %v2642
  %v2644 = vmul.f32 %v2584, 1.442695
  %v2645 = vpow.pop %v2644
  %v2646 = vmul.f32 %v2585, 1.442695
  %v2647 = vpow.pop %v2646
  %v2648 = vmul.f32 %v2586, 1.442695
  %v2649 = vpow.pop %v2648
  %v2650 = vmul.f32 %v2587, 1.442695
  %v2651 = vpow.pop %v2650
  %v2652 = vmul.f32 %v2588, 1.442695
  %v2653 = vpow.pop %v2652
  %v2654 = vmul.f32 %v2589, 1.442695
  %v2655 = vpow.pop %v2654
  %v2656 = vmul.f32 %v2590, 1.442695
  %v2657 = vpow.pop %v2656
  %v2658 = vmul.f32 %v2591, 1.442695
  %v2659 = vpow.pop %v2658
  %v2660 = vmul.f32 %v2592, 1.442695
  %v2661 = vpow.pop %v2660
  %v2662 = vmul.f32 %v2593, 1.442695
  %v2663 = vpow.pop %v2662
  %v2664 = vmul.f32 %v2594, 1.442695
  %v2665 = vpow.pop %v2664
  %v2666 = vmul.f32 %v2595, 1.442695
  %v2667 = vpow.pop %v2666
  %v2668 = vmul.f32 %v2596, 1.442695
  %v2669 = vpow.pop %v2668
  %v2670 = vmul.f32 %v2597, 1.442695
  %v2671 = vpow.pop %v2670
  %v2672 = vmul.f32 %v2598, 1.442695
  %v2673 = vpow.pop %v2672
  %v2674 = vmul.f32 %v2599, 1.442695
  %v2675 = vpow.pop %v2674
  %v2676 = vsub.f32 %v2601, 1.0
  %v2677 = vsub.f32 %v2603, 1.0
  %v2678 = vsub.f32 %v2605, 1.0
  %v2679 = vsub.f32 %v2607, 1.0
  %v2680 = vsub.f32 %v2609, 1.0
  %v2681 = vsub.f32 %v2611, 1.0
  %v2682 = vsub.f32 %v2613, 1.0
  %v2683 = vsub.f32 %v2615, 1.0
  %v2684 = vsub.f32 %v2617, 1.0
  %v2685 = vsub.f32 %v2619, 1.0
  %v2686 = vsub.f32 %v2621, 1.0
  %v2687 = vsub.f32 %v2623, 1.0
  %v2688 = vsub.f32 %v2625, 1.0
  %v2689 = vsub.f32 %v2627, 1.0
  %v2690 = vsub.f32 %v2629, 1.0
  %v2691 = vsub.f32 %v2631, 1.0
  %v2692 = vsub.f32 %v2633, 1.0
  %v2693 = vsub.f32 %v2635, 1.0
  %v2694 = vsub.f32 %v2637, 1.0
  %v2695 = vsub.f32 %v2639, 1.0
  %v2696 = vsub.f32 %v2641, 1.0
  %v2697 = vsub.f32 %v2643, 1.0
  %v2698 = vsub.f32 %v2645, 1.0
  %v2699 = vsub.f32 %v2647, 1.0
  %v2700 = vsub.f32 %v2649, 1.0
  %v2701 = vsub.f32 %v2651, 1.0
  %v2702 = vsub.f32 %v2653, 1.0
  %v2703 = vsub.f32 %v2655, 1.0
  %v2704 = vsub.f32 %v2657, 1.0
  %v2705 = vsub.f32 %v2659, 1.0
  %v2706 = vsub.f32 %v2661, 1.0
  %v2707 = vsub.f32 %v2663, 1.0
  %v2708 = vsub.f32 %v2665, 1.0
  %v2709 = vsub.f32 %v2667, 1.0
  %v2710 = vsub.f32 %v2669, 1.0
  %v2711 = vsub.f32 %v2671, 1.0
  %v2712 = vsub.f32 %v2673, 1.0
  %v2713 = vsub.f32 %v2675, 1.0
  %v2714 = vmul.f32 %v2676, 1.6732632
  %v2715 = vmul.f32 %v2677, 1.6732632
  %v2716 = vmul.f32 %v2678, 1.6732632
  %v2717 = vmul.f32 %v2679, 1.6732632
  %v2718 = vmul.f32 %v2680, 1.6732632
  %v2719 = vmul.f32 %v2681, 1.6732632
  %v2720 = vmul.f32 %v2682, 1.6732632
  %v2721 = vmul.f32 %v2683, 1.6732632
  %v2722 = vmul.f32 %v2684, 1.6732632
  %v2723 = vmul.f32 %v2685, 1.6732632
  %v2724 = vmul.f32 %v2686, 1.6732632
  %v2725 = vmul.f32 %v2687, 1.6732632
  %v2726 = vmul.f32 %v2688, 1.6732632
  %v2727 = vmul.f32 %v2689, 1.6732632
  %v2728 = vmul.f32 %v2690, 1.6732632
  %v2729 = vmul.f32 %v2691, 1.6732632
  %v2730 = vmul.f32 %v2692, 1.6732632
  %v2731 = vmul.f32 %v2693, 1.6732632
  %v2732 = vmul.f32 %v2694, 1.6732632
  %v2733 = vmul.f32 %v2695, 1.6732632
  %v2734 = vmul.f32 %v2696, 1.6732632
  %v2735 = vmul.f32 %v2697, 1.6732632
  %v2736 = vmul.f32 %v2698, 1.6732632
  %v2737 = vmul.f32 %v2699, 1.6732632
  %v2738 = vmul.f32 %v2700, 1.6732632
  %v2739 = vmul.f32 %v2701, 1.6732632
  %v2740 = vmul.f32 %v2702, 1.6732632
  %v2741 = vmul.f32 %v2703, 1.6732632
  %v2742 = vmul.f32 %v2704, 1.6732632
  %v2743 = vmul.f32 %v2705, 1.6732632
  %v2744 = vmul.f32 %v2706, 1.6732632
  %v2745 = vmul.f32 %v2707, 1.6732632
  %v2746 = vmul.f32 %v2708, 1.6732632
  %v2747 = vmul.f32 %v2709, 1.6732632
  %v2748 = vmul.f32 %v2710, 1.6732632
  %v2749 = vmul.f32 %v2711, 1.6732632
  %v2750 = vmul.f32 %v2712, 1.6732632
  %v2751 = vmul.f32 %v2713, 1.6732632
  %v2752 = vsel %vm2524, %v2430, %v2714
  %v2753 = vsel %vm2525, %v2432, %v2715
  %v2754 = vsel %vm2526, %v2435, %v2716
  %v2755 = vsel %vm2527, %v2437, %v2717
  %v2756 = vsel %vm2528, %v2440, %v2718
  %v2757 = vsel %vm2529, %v2442, %v2719
  %v2758 = vsel %vm2530, %v2445, %v2720
  %v2759 = vsel %vm2531, %v2447, %v2721
  %v2760 = vsel %vm2532, %v2450, %v2722
  %v2761 = vsel %vm2533, %v2452, %v2723
  %v2762 = vsel %vm2534, %v2455, %v2724
  %v2763 = vsel %vm2535, %v2457, %v2725
  %v2764 = vsel %vm2536, %v2460, %v2726
  %v2765 = vsel %vm2537, %v2462, %v2727
  %v2766 = vsel %vm2538, %v2465, %v2728
  %v2767 = vsel %vm2539, %v2467, %v2729
  %v2768 = vsel %vm2540, %v2470, %v2730
  %v2769 = vsel %vm2541, %v2472, %v2731
  %v2770 = vsel %vm2542, %v2475, %v2732
  %v2771 = vsel %vm2543, %v2477, %v2733
  %v2772 = vsel %vm2544, %v2480, %v2734
  %v2773 = vsel %vm2545, %v2482, %v2735
  %v2774 = vsel %vm2546, %v2485, %v2736
  %v2775 = vsel %vm2547, %v2487, %v2737
  %v2776 = vsel %vm2548, %v2490, %v2738
  %v2777 = vsel %vm2549, %v2492, %v2739
  %v2778 = vsel %vm2550, %v2495, %v2740
  %v2779 = vsel %vm2551, %v2497, %v2741
  %v2780 = vsel %vm2552, %v2500, %v2742
  %v2781 = vsel %vm2553, %v2502, %v2743
  %v2782 = vsel %vm2554, %v2505, %v2744
  %v2783 = vsel %vm2555, %v2507, %v2745
  %v2784 = vsel %vm2556, %v2510, %v2746
  %v2785 = vsel %vm2557, %v2512, %v2747
  %v2786 = vsel %vm2558, %v2515, %v2748
  %v2787 = vsel %vm2559, %v2517, %v2749
  %v2788 = vsel %vm2560, %v2520, %v2750
  %v2789 = vsel %vm2561, %v2522, %v2751
  %v2790 = vmul.f32 %v2752, 1.050701
  %v2791 = vmul.f32 %v2753, 1.050701
  %v2792 = vmul.f32 %v2754, 1.050701
  %v2793 = vmul.f32 %v2755, 1.050701
  %v2794 = vmul.f32 %v2756, 1.050701
  %v2795 = vmul.f32 %v2757, 1.050701
  %v2796 = vmul.f32 %v2758, 1.050701
  %v2797 = vmul.f32 %v2759, 1.050701
  %v2798 = vmul.f32 %v2760, 1.050701
  %v2799 = vmul.f32 %v2761, 1.050701
  %v2800 = vmul.f32 %v2762, 1.050701
  %v2801 = vmul.f32 %v2763, 1.050701
  %v2802 = vmul.f32 %v2764, 1.050701
  %v2803 = vmul.f32 %v2765, 1.050701
  %v2804 = vmul.f32 %v2766, 1.050701
  %v2805 = vmul.f32 %v2767, 1.050701
  %v2806 = vmul.f32 %v2768, 1.050701
  %v2807 = vmul.f32 %v2769, 1.050701
  %v2808 = vmul.f32 %v2770, 1.050701
  %v2809 = vmul.f32 %v2771, 1.050701
  %v2810 = vmul.f32 %v2772, 1.050701
  %v2811 = vmul.f32 %v2773, 1.050701
  %v2812 = vmul.f32 %v2774, 1.050701
  %v2813 = vmul.f32 %v2775, 1.050701
  %v2814 = vmul.f32 %v2776, 1.050701
  %v2815 = vmul.f32 %v2777, 1.050701
  %v2816 = vmul.f32 %v2778, 1.050701
  %v2817 = vmul.f32 %v2779, 1.050701
  %v2818 = vmul.f32 %v2780, 1.050701
  %v2819 = vmul.f32 %v2781, 1.050701
  %v2820 = vmul.f32 %v2782, 1.050701
  %v2821 = vmul.f32 %v2783, 1.050701
  %v2822 = vmul.f32 %v2784, 1.050701
  %v2823 = vmul.f32 %v2785, 1.050701
  %v2824 = vmul.f32 %v2786, 1.050701
  %v2825 = vmul.f32 %v2787, 1.050701
  %v2826 = vmul.f32 %v2788, 1.050701
  %v2827 = vmul.f32 %v2789, 1.050701
  %v2828 = vpack.c.bf16 %v2791, %v2790
  %v2829 = vpack.c.bf16 %v2793, %v2792
  %v2830 = vpack.c.bf16 %v2795, %v2794
  %v2831 = vpack.c.bf16 %v2797, %v2796
  %v2832 = vpack.c.bf16 %v2799, %v2798
  %v2833 = vpack.c.bf16 %v2801, %v2800
  %v2834 = vpack.c.bf16 %v2803, %v2802
  %v2835 = vpack.c.bf16 %v2805, %v2804
  %v2836 = vpack.c.bf16 %v2807, %v2806
  %v2837 = vpack.c.bf16 %v2809, %v2808
  %v2838 = vpack.c.bf16 %v2811, %v2810
  %v2839 = vpack.c.bf16 %v2813, %v2812
  %v2840 = vpack.c.bf16 %v2815, %v2814
  %v2841 = vpack.c.bf16 %v2817, %v2816
  %v2842 = vpack.c.bf16 %v2819, %v2818
  %v2843 = vpack.c.bf16 %v2821, %v2820
  %v2844 = vpack.c.bf16 %v2823, %v2822
  %v2845 = vpack.c.bf16 %v2825, %v2824
  %v2846 = vpack.c.bf16 %v2827, %v2826
  %v2847 = vld [vmem:[%s4] sm:$0xf]
  %v2848 = vld [vmem:[%s4 + $0x4] sm:$0xf]
  %v2849 = vld [vmem:[%s4 + $0x8] sm:$0xf]
  %v2850 = vld [vmem:[%s4 + $0xc] sm:$0xf]
  %v2851 = vld [vmem:[%s4 + $0x10] sm:$0xf]
  %v2852 = vld [vmem:[%s4 + $0x14] sm:$0xf]
  %v2853 = vld [vmem:[%s4 + $0x18] sm:$0xf]
  %v2854 = vld [vmem:[%s4 + $0x1c] sm:$0xf]
  %v2863 = vunpack.c.l.b16 %v2847
  %v2864 = vunpack.c.l.b16 %v2848
  %v2865 = vunpack.c.l.b16 %v2849
  %v2866 = vunpack.c.l.b16 %v2850
  %v2867 = vunpack.c.l.b16 %v2851
  %v2868 = vunpack.c.l.b16 %v2852
  %v2869 = vunpack.c.l.b16 %v2853
  %v2870 = vunpack.c.l.b16 %v2854
  %v2871 = vpack.c.b16 %v2864, %v2863
  %v2872 = vpack.c.b16 %v2866, %v2865
  %v2873 = vpack.c.b16 %v2868, %v2867
  %v2874 = vpack.c.b16 %v2870, %v2869
  %v2880 = vsel %vm1143, %v2828, 0
  %v2883 = vsel %vm1143, %v2829, 0
  %v2886 = vsel %vm1143, %v2830, 0
  %v2889 = vsel %vm1143, %v2831, 0
  %v2892 = vsel %vm1143, %v2832, 0
  %v2895 = vsel %vm1143, %v2833, 0
  %v2898 = vsel %vm1143, %v2834, 0
  %v2901 = vsel %vm1143, %v2835, 0
  %v2904 = vsel %vm1143, %v2836, 0
  %v2907 = vsel %vm1143, %v2837, 0
  %v2910 = vsel %vm1143, %v2838, 0
  %v2913 = vsel %vm1143, %v2839, 0
  %v2916 = vsel %vm1143, %v2840, 0
  %v2919 = vsel %vm1143, %v2841, 0
  %v2922 = vsel %vm1143, %v2842, 0
  %v2925 = vsel %vm1143, %v2843, 0
  %v2928 = vsel %vm1143, %v2844, 0
  %v2931 = vsel %vm1143, %v2845, 0
  %v2934 = vsel %vm1143, %v2846, 0
  %2936 = vmatpush.bf16.msra.mxu0 0
  %2937 = vmatpush.bf16.msra.mxu0 0
  %2938 = vmatpush.bf16.msra.mxu0 0
  %2939 = vmatpush.bf16.msra.mxu0 0
  %2940 = vmatpush.bf16.msra.mxu0 %v2874
  %2941 = vmatpush.bf16.msra.mxu0 %v2873
  %2942 = vmatpush.bf16.msra.mxu0 %v2872
  %2943 = vmatpush.bf16.msra.mxu0 %v2871
  %2944 = vmatmul.bf16.gmra.mxu0 %v2880
  %v2945 = vpop.f32.mrf.mxu0
  %v2946 = vadd.f32 0.0, %v2945
  %v2947 = vpop.f32.mrf.mxu0
  %v2948 = vadd.f32 0.0, %v2947
  %2949 = vmatmul.bf16.gmra.mxu0 %v2883
  %v2950 = vpop.f32.mrf.mxu0
  %v2951 = vadd.f32 0.0, %v2950
  %v2952 = vpop.f32.mrf.mxu0
  %v2953 = vadd.f32 0.0, %v2952
  %2954 = vmatmul.bf16.gmra.mxu0 %v2886
  %v2955 = vpop.f32.mrf.mxu0
  %v2956 = vadd.f32 0.0, %v2955
  %v2957 = vpop.f32.mrf.mxu0
  %v2958 = vadd.f32 0.0, %v2957
  %2959 = vmatmul.bf16.gmra.mxu0 %v2889
  %v2960 = vpop.f32.mrf.mxu0
  %v2961 = vadd.f32 0.0, %v2960
  %v2962 = vpop.f32.mrf.mxu0
  %v2963 = vadd.f32 0.0, %v2962
  %2964 = vmatmul.bf16.gmra.mxu0 %v2892
  %v2965 = vpop.f32.mrf.mxu0
  %v2966 = vadd.f32 0.0, %v2965
  %v2967 = vpop.f32.mrf.mxu0
  %v2968 = vadd.f32 0.0, %v2967
  %2969 = vmatmul.bf16.gmra.mxu0 %v2895
  %v2970 = vpop.f32.mrf.mxu0
  %v2971 = vadd.f32 0.0, %v2970
  %v2972 = vpop.f32.mrf.mxu0
  %v2973 = vadd.f32 0.0, %v2972
  %2974 = vmatmul.bf16.gmra.mxu0 %v2898
  %v2975 = vpop.f32.mrf.mxu0
  %v2976 = vadd.f32 0.0, %v2975
  %v2977 = vpop.f32.mrf.mxu0
  %v2978 = vadd.f32 0.0, %v2977
  %2979 = vmatmul.bf16.gmra.mxu0 %v2901
  %v2980 = vpop.f32.mrf.mxu0
  %v2981 = vadd.f32 0.0, %v2980
  %v2982 = vpop.f32.mrf.mxu0
  %v2983 = vadd.f32 0.0, %v2982
  %2984 = vmatmul.bf16.gmra.mxu0 %v2904
  %v2985 = vpop.f32.mrf.mxu0
  %v2986 = vadd.f32 0.0, %v2985
  %v2987 = vpop.f32.mrf.mxu0
  %v2988 = vadd.f32 0.0, %v2987
  %2989 = vmatmul.bf16.gmra.mxu0 %v2907
  %v2990 = vpop.f32.mrf.mxu0
  %v2991 = vadd.f32 0.0, %v2990
  %v2992 = vpop.f32.mrf.mxu0
  %v2993 = vadd.f32 0.0, %v2992
  %2994 = vmatmul.bf16.gmra.mxu0 %v2910
  %v2995 = vpop.f32.mrf.mxu0
  %v2996 = vadd.f32 0.0, %v2995
  %v2997 = vpop.f32.mrf.mxu0
  %v2998 = vadd.f32 0.0, %v2997
  %2999 = vmatmul.bf16.gmra.mxu0 %v2913
  %v3000 = vpop.f32.mrf.mxu0
  %v3001 = vadd.f32 0.0, %v3000
  %v3002 = vpop.f32.mrf.mxu0
  %v3003 = vadd.f32 0.0, %v3002
  %3004 = vmatmul.bf16.gmra.mxu0 %v2916
  %v3005 = vpop.f32.mrf.mxu0
  %v3006 = vadd.f32 0.0, %v3005
  %v3007 = vpop.f32.mrf.mxu0
  %v3008 = vadd.f32 0.0, %v3007
  %3009 = vmatmul.bf16.gmra.mxu0 %v2919
  %v3010 = vpop.f32.mrf.mxu0
  %v3011 = vadd.f32 0.0, %v3010
  %v3012 = vpop.f32.mrf.mxu0
  %v3013 = vadd.f32 0.0, %v3012
  %3014 = vmatmul.bf16.gmra.mxu0 %v2922
  %v3015 = vpop.f32.mrf.mxu0
  %v3016 = vadd.f32 0.0, %v3015
  %v3017 = vpop.f32.mrf.mxu0
  %v3018 = vadd.f32 0.0, %v3017
  %3019 = vmatmul.bf16.gmra.mxu0 %v2925
  %v3020 = vpop.f32.mrf.mxu0
  %v3021 = vadd.f32 0.0, %v3020
  %v3022 = vpop.f32.mrf.mxu0
  %v3023 = vadd.f32 0.0, %v3022
  %3024 = vmatmul.bf16.gmra.mxu0 %v2928
  %v3025 = vpop.f32.mrf.mxu0
  %v3026 = vadd.f32 0.0, %v3025
  %v3027 = vpop.f32.mrf.mxu0
  %v3028 = vadd.f32 0.0, %v3027
  %3029 = vmatmul.bf16.gmra.mxu0 %v2931
  %v3030 = vpop.f32.mrf.mxu0
  %v3031 = vadd.f32 0.0, %v3030
  %v3032 = vpop.f32.mrf.mxu0
  %v3033 = vadd.f32 0.0, %v3032
  %3034 = vmatmul.bf16.gmra.mxu0 %v2934
  %v3035 = vpop.f32.mrf.mxu0
  %v3036 = vadd.f32 0.0, %v3035
  %v3037 = vpop.f32.mrf.mxu0
  %v3038 = vadd.f32 0.0, %v3037
  %3039 = vdwg.mxu0
  %vm3040 = vcmask 23552
  %3041 = vst.msk [vmem:[%s5] sm:$0xff] %vm3040, %v2946
  %3042 = vst.msk [vmem:[%s5 + $0x8] sm:$0xff] %vm3040, %v2948
  %3043 = vst.msk [vmem:[%s5 + $0x10] sm:$0xff] %vm3040, %v2951
  %3044 = vst.msk [vmem:[%s5 + $0x18] sm:$0xff] %vm3040, %v2953
  %3045 = vst.msk [vmem:[%s5 + $0x20] sm:$0xff] %vm3040, %v2956
  %3046 = vst.msk [vmem:[%s5 + $0x28] sm:$0xff] %vm3040, %v2958
  %3047 = vst.msk [vmem:[%s5 + $0x30] sm:$0xff] %vm3040, %v2961
  %3048 = vst.msk [vmem:[%s5 + $0x38] sm:$0xff] %vm3040, %v2963
  %3049 = vst.msk [vmem:[%s5 + $0x40] sm:$0xff] %vm3040, %v2966
  %3050 = vst.msk [vmem:[%s5 + $0x48] sm:$0xff] %vm3040, %v2968
  %3051 = vst.msk [vmem:[%s5 + $0x50] sm:$0xff] %vm3040, %v2971
  %3052 = vst.msk [vmem:[%s5 + $0x58] sm:$0xff] %vm3040, %v2973
  %3053 = vst.msk [vmem:[%s5 + $0x60] sm:$0xff] %vm3040, %v2976
  %3054 = vst.msk [vmem:[%s5 + $0x68] sm:$0xff] %vm3040, %v2978
  %3055 = vst.msk [vmem:[%s5 + $0x70] sm:$0xff] %vm3040, %v2981
  %3056 = vst.msk [vmem:[%s5 + $0x78] sm:$0xff] %vm3040, %v2983
  %3057 = vst.msk [vmem:[%s5 + $0x80] sm:$0xff] %vm3040, %v2986
  %3058 = vst.msk [vmem:[%s5 + $0x88] sm:$0xff] %vm3040, %v2988
  %3059 = vst.msk [vmem:[%s5 + $0x90] sm:$0xff] %vm3040, %v2991
  %3060 = vst.msk [vmem:[%s5 + $0x98] sm:$0xff] %vm3040, %v2993
  %3061 = vst.msk [vmem:[%s5 + $0xa0] sm:$0xff] %vm3040, %v2996
  %3062 = vst.msk [vmem:[%s5 + $0xa8] sm:$0xff] %vm3040, %v2998
  %3063 = vst.msk [vmem:[%s5 + $0xb0] sm:$0xff] %vm3040, %v3001
  %3064 = vst.msk [vmem:[%s5 + $0xb8] sm:$0xff] %vm3040, %v3003
  %3065 = vst.msk [vmem:[%s5 + $0xc0] sm:$0xff] %vm3040, %v3006
  %3066 = vst.msk [vmem:[%s5 + $0xc8] sm:$0xff] %vm3040, %v3008
  %3067 = vst.msk [vmem:[%s5 + $0xd0] sm:$0xff] %vm3040, %v3011
  %3068 = vst.msk [vmem:[%s5 + $0xd8] sm:$0xff] %vm3040, %v3013
  %3069 = vst.msk [vmem:[%s5 + $0xe0] sm:$0xff] %vm3040, %v3016
  %3070 = vst.msk [vmem:[%s5 + $0xe8] sm:$0xff] %vm3040, %v3018
  %3071 = vst.msk [vmem:[%s5 + $0xf0] sm:$0xff] %vm3040, %v3021
  %3072 = vst.msk [vmem:[%s5 + $0xf8] sm:$0xff] %vm3040, %v3023
  %3073 = vst.msk [vmem:[%s5 + $0x100] sm:$0xff] %vm3040, %v3026
  %3074 = vst.msk [vmem:[%s5 + $0x108] sm:$0xff] %vm3040, %v3028
  %3075 = vst.msk [vmem:[%s5 + $0x110] sm:$0xff] %vm3040, %v3031
  %3076 = vst.msk [vmem:[%s5 + $0x118] sm:$0xff] %vm3040, %v3033
  %3077 = vst.msk [vmem:[%s5 + $0x120] sm:$0xff] %vm3040, %v3036
  %3078 = vst.msk [vmem:[%s5 + $0x128] sm:$0xff] %vm3040, %v3038
  %3079 = vrot.lane.b32.xlu0 %v1211, 67
  %v3080 = vpop.permute.xlu0 %3079
  %3081 = vrot.lane.b32.xlu0 %v1213, 67
  %v3082 = vpop.permute.xlu0 %3081
  %3083 = vrot.lane.b32.xlu0 %v1216, 67
  %v3084 = vpop.permute.xlu0 %3083
  %3085 = vrot.lane.b32.xlu0 %v1218, 67
  %v3086 = vpop.permute.xlu0 %3085
  %3087 = vrot.lane.b32.xlu0 %v1221, 67
  %v3088 = vpop.permute.xlu0 %3087
  %3089 = vrot.lane.b32.xlu0 %v1223, 67
  %v3090 = vpop.permute.xlu0 %3089
  %3091 = vrot.lane.b32.xlu0 %v1226, 67
  %v3092 = vpop.permute.xlu0 %3091
  %3093 = vrot.lane.b32.xlu0 %v1228, 67
  %v3094 = vpop.permute.xlu0 %3093
  %3095 = vrot.lane.b32.xlu0 %v1231, 67
  %v3096 = vpop.permute.xlu0 %3095
  %3097 = vrot.lane.b32.xlu0 %v1233, 67
  %v3098 = vpop.permute.xlu0 %3097
  %3099 = vrot.lane.b32.xlu0 %v1236, 67
  %v3100 = vpop.permute.xlu0 %3099
  %3101 = vrot.lane.b32.xlu0 %v1238, 67
  %v3102 = vpop.permute.xlu0 %3101
  %3103 = vrot.lane.b32.xlu0 %v1241, 67
  %v3104 = vpop.permute.xlu0 %3103
  %3105 = vrot.lane.b32.xlu0 %v1243, 67
  %v3106 = vpop.permute.xlu0 %3105
  %3107 = vrot.lane.b32.xlu0 %v1246, 67
  %v3108 = vpop.permute.xlu0 %3107
  %3109 = vrot.lane.b32.xlu0 %v1248, 67
  %v3110 = vpop.permute.xlu0 %3109
  %3111 = vrot.lane.b32.xlu0 %v1251, 67
  %v3112 = vpop.permute.xlu0 %3111
  %3113 = vrot.lane.b32.xlu0 %v1253, 67
  %v3114 = vpop.permute.xlu0 %3113
  %3115 = vrot.lane.b32.xlu0 %v1256, 67
  %v3116 = vpop.permute.xlu0 %3115
  %3117 = vrot.lane.b32.xlu0 %v1258, 67
  %v3118 = vpop.permute.xlu0 %3117
  %3119 = vrot.lane.b32.xlu0 %v1261, 67
  %v3120 = vpop.permute.xlu0 %3119
  %3121 = vrot.lane.b32.xlu0 %v1263, 67
  %v3122 = vpop.permute.xlu0 %3121
  %3123 = vrot.lane.b32.xlu0 %v1266, 67
  %v3124 = vpop.permute.xlu0 %3123
  %3125 = vrot.lane.b32.xlu0 %v1268, 67
  %v3126 = vpop.permute.xlu0 %3125
  %3127 = vrot.lane.b32.xlu0 %v1271, 67
  %v3128 = vpop.permute.xlu0 %3127
  %3129 = vrot.lane.b32.xlu0 %v1273, 67
  %v3130 = vpop.permute.xlu0 %3129
  %3131 = vrot.lane.b32.xlu0 %v1276, 67
  %v3132 = vpop.permute.xlu0 %3131
  %3133 = vrot.lane.b32.xlu0 %v1278, 67
  %v3134 = vpop.permute.xlu0 %3133
  %3135 = vrot.lane.b32.xlu0 %v1281, 67
  %v3136 = vpop.permute.xlu0 %3135
  %3137 = vrot.lane.b32.xlu0 %v1283, 67
  %v3138 = vpop.permute.xlu0 %3137
  %3139 = vrot.lane.b32.xlu0 %v1286, 67
  %v3140 = vpop.permute.xlu0 %3139
  %3141 = vrot.lane.b32.xlu0 %v1288, 67
  %v3142 = vpop.permute.xlu0 %3141
  %3143 = vrot.lane.b32.xlu0 %v1291, 67
  %v3144 = vpop.permute.xlu0 %3143
  %3145 = vrot.lane.b32.xlu0 %v1293, 67
  %v3146 = vpop.permute.xlu0 %3145
  %3147 = vrot.lane.b32.xlu0 %v1296, 67
  %v3148 = vpop.permute.xlu0 %3147
  %3149 = vrot.lane.b32.xlu0 %v1298, 67
  %v3150 = vpop.permute.xlu0 %3149
  %3151 = vrot.lane.b32.xlu0 %v1301, 67
  %v3152 = vpop.permute.xlu0 %3151
  %3153 = vrot.lane.b32.xlu0 %v1303, 67
  %v3154 = vpop.permute.xlu0 %3153
  %vm3193 = vcmask 31768
  %3194 = vst.msk [vmem:[%s5] sm:$0xff] %vm3193, %v3080
  %3195 = vst.msk [vmem:[%s5 + $0x8] sm:$0xff] %vm3193, %v3082
  %3196 = vst.msk [vmem:[%s5 + $0x10] sm:$0xff] %vm3193, %v3084
  %3197 = vst.msk [vmem:[%s5 + $0x18] sm:$0xff] %vm3193, %v3086
  %3198 = vst.msk [vmem:[%s5 + $0x20] sm:$0xff] %vm3193, %v3088
  %3199 = vst.msk [vmem:[%s5 + $0x28] sm:$0xff] %vm3193, %v3090
  %3200 = vst.msk [vmem:[%s5 + $0x30] sm:$0xff] %vm3193, %v3092
  %3201 = vst.msk [vmem:[%s5 + $0x38] sm:$0xff] %vm3193, %v3094
  %3202 = vst.msk [vmem:[%s5 + $0x40] sm:$0xff] %vm3193, %v3096
  %3203 = vst.msk [vmem:[%s5 + $0x48] sm:$0xff] %vm3193, %v3098
  %3204 = vst.msk [vmem:[%s5 + $0x50] sm:$0xff] %vm3193, %v3100
  %3205 = vst.msk [vmem:[%s5 + $0x58] sm:$0xff] %vm3193, %v3102
  %3206 = vst.msk [vmem:[%s5 + $0x60] sm:$0xff] %vm3193, %v3104
  %3207 = vst.msk [vmem:[%s5 + $0x68] sm:$0xff] %vm3193, %v3106
  %3208 = vst.msk [vmem:[%s5 + $0x70] sm:$0xff] %vm3193, %v3108
  %3209 = vst.msk [vmem:[%s5 + $0x78] sm:$0xff] %vm3193, %v3110
  %3210 = vst.msk [vmem:[%s5 + $0x80] sm:$0xff] %vm3193, %v3112
  %3211 = vst.msk [vmem:[%s5 + $0x88] sm:$0xff] %vm3193, %v3114
  %3212 = vst.msk [vmem:[%s5 + $0x90] sm:$0xff] %vm3193, %v3116
  %3213 = vst.msk [vmem:[%s5 + $0x98] sm:$0xff] %vm3193, %v3118
  %3214 = vst.msk [vmem:[%s5 + $0xa0] sm:$0xff] %vm3193, %v3120
  %3215 = vst.msk [vmem:[%s5 + $0xa8] sm:$0xff] %vm3193, %v3122
  %3216 = vst.msk [vmem:[%s5 + $0xb0] sm:$0xff] %vm3193, %v3124
  %3217 = vst.msk [vmem:[%s5 + $0xb8] sm:$0xff] %vm3193, %v3126
  %3218 = vst.msk [vmem:[%s5 + $0xc0] sm:$0xff] %vm3193, %v3128
  %3219 = vst.msk [vmem:[%s5 + $0xc8] sm:$0xff] %vm3193, %v3130
  %3220 = vst.msk [vmem:[%s5 + $0xd0] sm:$0xff] %vm3193, %v3132
  %3221 = vst.msk [vmem:[%s5 + $0xd8] sm:$0xff] %vm3193, %v3134
  %3222 = vst.msk [vmem:[%s5 + $0xe0] sm:$0xff] %vm3193, %v3136
  %3223 = vst.msk [vmem:[%s5 + $0xe8] sm:$0xff] %vm3193, %v3138
  %3224 = vst.msk [vmem:[%s5 + $0xf0] sm:$0xff] %vm3193, %v3140
  %3225 = vst.msk [vmem:[%s5 + $0xf8] sm:$0xff] %vm3193, %v3142
  %3226 = vst.msk [vmem:[%s5 + $0x100] sm:$0xff] %vm3193, %v3144
  %3227 = vst.msk [vmem:[%s5 + $0x108] sm:$0xff] %vm3193, %v3146
  %3228 = vst.msk [vmem:[%s5 + $0x110] sm:$0xff] %vm3193, %v3148
  %3229 = vst.msk [vmem:[%s5 + $0x118] sm:$0xff] %vm3193, %v3150
  %3230 = vst.msk [vmem:[%s5 + $0x120] sm:$0xff] %vm3193, %v3152
  %3231 = vst.msk [vmem:[%s5 + $0x128] sm:$0xff] %vm3193, %v3154
  // Predicated region
  $region22: #{colorsdfnet_forward.1} parent=0 // pred_check
    _
  $region23: #{colorsdfnet_forward.1} parent=0 // pred_check_branch
    %3233 = sbr.rel (0) target = $region25
  $region24: #{colorsdfnet_forward.1} parent=0 // pred_region
    _
  $region25: #{colorsdfnet_forward.1} parent=0 // pred_fallthru
    _
  // Predicated region
  $region26: #{colorsdfnet_forward.1} parent=0 // pred_check
    _
  $region27: #{colorsdfnet_forward.1} parent=0 // pred_check_branch
    %3235 = sbr.rel (0) target = $region29
  $region28: #{colorsdfnet_forward.1} parent=0 // pred_region
    _
  $region29: #{colorsdfnet_forward.1} parent=0 // pred_fallthru
    _

</llo_original>
